<compile_context>
chip_gen: v5e
topology: v5e:2x2
jax: 0.10.0
libtpu: 0.0.40
codegen_flags: <defaults>
</compile_context>

<pallas_src>
import functools

import jax
import jax.numpy as jnp
from jax.experimental import pallas as pl
from jax.experimental.pallas import tpu as pltpu


def _qe_tag_embeddings_kernel(ids_smem, pos_smem,           # scalar prefetch (SMEM)
                              lang_ids_ref, lang_tab_ref,   # VMEM inputs
                              word_hbm, pos_hbm,            # HBM (ANY) inputs
                              out_ref,                      # VMEM output tile
                              wbuf, pbuf, sem,              # scratch
                              *, tile):
    i = pl.program_id(0)
    base = i * tile

    # --- DMA row-gather of word and position rows for this token tile -----
    # Issue all 2*tile copies first (kept in flight), then wait. Each copy is
    # one H-wide fp32 row: HBM-latency bound, so in-flight depth matters.
    copies = []
    for t in range(tile):                       # tile is small & static
        wid = ids_smem[base + t]
        pid = pos_smem[base + t]
        cw = pltpu.make_async_copy(word_hbm.at[pl.ds(wid, 1), :],
                                   wbuf.at[pl.ds(t, 1), :],
                                   sem.at[0, t])
        cp = pltpu.make_async_copy(pos_hbm.at[pl.ds(pid, 1), :],
                                   pbuf.at[pl.ds(t, 1), :],
                                   sem.at[1, t])
        cw.start()
        cp.start()
        copies.append((cw, cp))
    for cw, cp in copies:
        cw.wait()
        cp.wait()

    # --- language embedding (+ token-type row 0 pre-added in the wrapper) --
    # token_type table lookup is always row 0 (ids forced to zeros upstream),
    # and the language table has only 2 rows -> a VPU select, not a matmul.
    lang = lang_ids_ref[...]                       # [tile, 1] int32 in {0, 1}
    row0 = lang_tab_ref[0:1, :]                    # [1, H]
    row1 = lang_tab_ref[1:2, :]                    # [1, H]
    lang_e = jnp.where(lang == 0, row0, row1)      # [tile, H]

    out_ref[...] = wbuf[...] + pbuf[...] + lang_e


def roberta_qe_tag_embeddings(input_ids, token_type_ids, word_emb, pos_emb,
                              type_emb, lang_emb, *, pad_idx, token_tile=8):
    B, S = input_ids.shape
    H = word_emb.shape[1]
    N = B * S

    word_emb = word_emb.astype(jnp.float32)
    pos_emb = pos_emb.astype(jnp.float32)

    # RoBERTa position ids (create_position_ids_from_input_ids), computed in
    # the wrapper: a trivial [B, S] int op, and removing it from the kernel
    # lets the grid tile over tokens without a full-row dependency.
    mask = (input_ids != pad_idx).astype(jnp.int32)
    pos_ids = jnp.cumsum(mask, axis=1) * mask + pad_idx

    # Flatten over tokens and pad to a multiple of the token tile. Padded
    # tokens gather the (zeroed) pad rows; their output is sliced off below.
    n_tiles = pl.cdiv(N, token_tile)
    n_pad = n_tiles * token_tile
    ids_flat = jnp.full((n_pad,), pad_idx, jnp.int32).at[:N].set(
        input_ids.reshape(-1).astype(jnp.int32))
    pos_flat = jnp.full((n_pad,), pad_idx, jnp.int32).at[:N].set(
        pos_ids.reshape(-1).astype(jnp.int32))
    lang_flat = jnp.zeros((n_pad, 1), jnp.int32).at[:N, 0].set(
        token_type_ids.reshape(-1).astype(jnp.int32))

    # token_type_ids are forced to zeros in the base forward, so that lookup
    # is always row 0; fold it into the 2-row language table once here.
    lang_plus = (lang_emb.astype(jnp.float32)
                 + type_emb[0].astype(jnp.float32)[None, :])

    kernel = functools.partial(_qe_tag_embeddings_kernel, tile=token_tile)

    out_flat = pl.pallas_call(
        kernel,
        out_shape=jax.ShapeDtypeStruct((n_pad, H), jnp.float32),
        grid_spec=pltpu.PrefetchScalarGridSpec(
            num_scalar_prefetch=2,                 # ids_flat, pos_flat -> SMEM
            grid=(n_tiles,),
            in_specs=[
                pl.BlockSpec((token_tile, 1), lambda i, ids, pos: (i, 0)),
                pl.BlockSpec((2, H), lambda i, ids, pos: (0, 0)),
                pl.BlockSpec(memory_space=pl.ANY),   # word table stays in HBM
                pl.BlockSpec(memory_space=pl.ANY),   # pos table stays in HBM
            ],
            out_specs=pl.BlockSpec((token_tile, H), lambda i, ids, pos: (i, 0)),
            scratch_shapes=[
                pltpu.VMEM((token_tile, H), jnp.float32),     # word rows
                pltpu.VMEM((token_tile, H), jnp.float32),     # pos rows
                pltpu.SemaphoreType.DMA((2, token_tile)),
            ]),
        compiler_params=pltpu.CompilerParams(
            dimension_semantics=("parallel",)),
    )(ids_flat, pos_flat, lang_flat, lang_plus, word_emb, pos_emb)

    return out_flat[:N].reshape(B, S, H)


def _reference(input_ids, token_type_ids, word_emb, pos_emb, type_emb,
               lang_emb, pad_idx):
    mask = (input_ids != pad_idx).astype(jnp.int32)
    pos_ids = jnp.cumsum(mask, axis=1) * mask + pad_idx
    return (word_emb[input_ids]
            + pos_emb[pos_ids]
            + type_emb[0][None, None, :]
            + lang_emb[token_type_ids])


if __name__ == "__main__":
    # Small synthetic config (RoBERTa uses pad_token_id = 1). H=128 keeps the
    # output lane-dense; at production (H=768) the same layout holds.
    B, S, H = 2, 8, 128
    VOCAB, MAX_POS, TYPE_VOCAB, PAD_IDX = 64, 32, 2, 1

    key = jax.random.PRNGKey(0)
    k_w, k_p, k_t, k_l, k_ids, k_tt = jax.random.split(key, 6)

    word_emb = 0.02 * jax.random.normal(k_w, (VOCAB, H), jnp.float32)
    pos_emb = 0.02 * jax.random.normal(k_p, (MAX_POS, H), jnp.float32)
    type_emb = 0.02 * jax.random.normal(k_t, (TYPE_VOCAB, H), jnp.float32)
    lang_emb = 0.02 * jax.random.normal(k_l, (2, H), jnp.float32)
    # nn.Embedding(padding_idx=...) zeroes the padding row at init.
    word_emb = word_emb.at[PAD_IDX].set(0.0)
    pos_emb = pos_emb.at[PAD_IDX].set(0.0)

    input_ids = jax.random.randint(k_ids, (B, S), 2, VOCAB, jnp.int32)
    # Pad tokens at the end of each row to exercise the position-id mask path.
    input_ids = input_ids.at[:, -2:].set(PAD_IDX)
    token_type_ids = jax.random.randint(k_tt, (B, S), 0, 2, jnp.int32)

    out = roberta_qe_tag_embeddings(input_ids, token_type_ids, word_emb,
                                    pos_emb, type_emb, lang_emb,
                                    pad_idx=PAD_IDX, token_tile=8)
    out = jax.block_until_ready(out)

    ref = _reference(input_ids, token_type_ids, word_emb, pos_emb, type_emb,
                     lang_emb, PAD_IDX)
    assert out.shape == (B, S, H) and out.dtype == jnp.float32
    assert jnp.allclose(out, ref, atol=1e-5, rtol=1e-5), "mismatch vs reference"

    # TODO(synk): LayerNorm/Dropout are invoked in the original forward but
    # their results are discarded, so they are intentionally not computed.
    print("KERNEL_OK")
</pallas_src>

<mosaic_0001>
module attributes {stable_mosaic.version = 11 : i64} {
  func.func @_qe_tag_embeddings_kernel(%arg0: i32, %arg1: memref<16xi32, #tpu.memory_space<smem>>, %arg2: memref<16xi32, #tpu.memory_space<smem>>, %arg3: memref<8x1xi32, #tpu.memory_space<vmem>>, %arg4: memref<2x128xf32, #tpu.memory_space<vmem>>, %arg5: memref<64x128xf32, #tpu.memory_space<any>>, %arg6: memref<32x128xf32, #tpu.memory_space<any>>, %arg7: memref<8x128xf32, #tpu.memory_space<vmem>>, %arg8: memref<8x128xf32, #tpu.memory_space<vmem>>, %arg9: memref<8x128xf32, #tpu.memory_space<vmem>>, %arg10: memref<2x8x!tpu.dma_semaphore, #tpu.memory_space<semaphore_mem>>) attributes {dimension_semantics = [#tpu.dimension_semantics<parallel>], iteration_bounds = array<i64: 2>, scalar_prefetch = 2 : i64, scratch_operands = 3 : i64, tpu.core_type = #tpu.core_type<tc>, window_params = [{transform_indices = @transform_0, window_bounds = array<i64: 8, 1>}, {pipeline_mode = #tpu.pipeline_mode<synchronous>, transform_indices = @transform_1, window_bounds = array<i64: 2, 128>}, {}, {}, {transform_indices = @transform_4, window_bounds = array<i64: 8, 128>}]} {
    %c8_i32 = arith.constant 8 : i32
    %0 = arith.muli %arg0, %c8_i32 : i32
    %c0_i32 = arith.constant 0 : i32
    %1 = arith.addi %0, %c0_i32 : i32
    %2 = arith.index_cast %1 : i32 to index
    %3 = memref.load %arg1[%2] : memref<16xi32, #tpu.memory_space<smem>>
    %c0_i32_0 = arith.constant 0 : i32
    %4 = arith.addi %0, %c0_i32_0 : i32
    %5 = arith.index_cast %4 : i32 to index
    %6 = memref.load %arg2[%5] : memref<16xi32, #tpu.memory_space<smem>>
    %c0_i32_1 = arith.constant 0 : i32
    %c0_i32_2 = arith.constant 0 : i32
    %c0_i32_3 = arith.constant 0 : i32
    %7 = tpu.memref_slice %arg5[%3, %c0_i32_3] : memref<64x128xf32, #tpu.memory_space<any>> -> memref<1x128xf32, #tpu.memory_space<any>>
    %c0_i32_4 = arith.constant 0 : i32
    %c0_i32_5 = arith.constant 0 : i32
    %8 = tpu.memref_slice %arg8[%c0_i32_4, %c0_i32_5] : memref<8x128xf32, #tpu.memory_space<vmem>> -> memref<1x128xf32, #tpu.memory_space<vmem>>
    %9 = tpu.memref_slice %arg10[%c0_i32_1, %c0_i32_2] : memref<2x8x!tpu.dma_semaphore, #tpu.memory_space<semaphore_mem>> -> memref<1x1x!tpu.dma_semaphore, #tpu.memory_space<semaphore_mem>>
    %10 = tpu.memref_squeeze %9 : memref<1x1x!tpu.dma_semaphore, #tpu.memory_space<semaphore_mem>> -> memref<!tpu.dma_semaphore, #tpu.memory_space<semaphore_mem>>
    tpu.enqueue_dma source(%7 : memref<1x128xf32, #tpu.memory_space<any>>) target(%8 : memref<1x128xf32, #tpu.memory_space<vmem>>) target_semaphore(%10 : memref<!tpu.dma_semaphore, #tpu.memory_space<semaphore_mem>>)
    %c1_i32 = arith.constant 1 : i32
    %c0_i32_6 = arith.constant 0 : i32
    %c0_i32_7 = arith.constant 0 : i32
    %11 = tpu.memref_slice %arg6[%6, %c0_i32_7] : memref<32x128xf32, #tpu.memory_space<any>> -> memref<1x128xf32, #tpu.memory_space<any>>
    %c0_i32_8 = arith.constant 0 : i32
    %c0_i32_9 = arith.constant 0 : i32
    %12 = tpu.memref_slice %arg9[%c0_i32_8, %c0_i32_9] : memref<8x128xf32, #tpu.memory_space<vmem>> -> memref<1x128xf32, #tpu.memory_space<vmem>>
    %13 = tpu.memref_slice %arg10[%c1_i32, %c0_i32_6] : memref<2x8x!tpu.dma_semaphore, #tpu.memory_space<semaphore_mem>> -> memref<1x1x!tpu.dma_semaphore, #tpu.memory_space<semaphore_mem>>
    %14 = tpu.memref_squeeze %13 : memref<1x1x!tpu.dma_semaphore, #tpu.memory_space<semaphore_mem>> -> memref<!tpu.dma_semaphore, #tpu.memory_space<semaphore_mem>>
    tpu.enqueue_dma source(%11 : memref<1x128xf32, #tpu.memory_space<any>>) target(%12 : memref<1x128xf32, #tpu.memory_space<vmem>>) target_semaphore(%14 : memref<!tpu.dma_semaphore, #tpu.memory_space<semaphore_mem>>)
    %c1_i32_10 = arith.constant 1 : i32
    %15 = arith.addi %0, %c1_i32_10 : i32
    %16 = arith.index_cast %15 : i32 to index
    %17 = memref.load %arg1[%16] : memref<16xi32, #tpu.memory_space<smem>>
    %c1_i32_11 = arith.constant 1 : i32
    %18 = arith.addi %0, %c1_i32_11 : i32
    %19 = arith.index_cast %18 : i32 to index
    %20 = memref.load %arg2[%19] : memref<16xi32, #tpu.memory_space<smem>>
    %c0_i32_12 = arith.constant 0 : i32
    %c1_i32_13 = arith.constant 1 : i32
    %c0_i32_14 = arith.constant 0 : i32
    %21 = tpu.memref_slice %arg5[%17, %c0_i32_14] : memref<64x128xf32, #tpu.memory_space<any>> -> memref<1x128xf32, #tpu.memory_space<any>>
    %c1_i32_15 = arith.constant 1 : i32
    %c0_i32_16 = arith.constant 0 : i32
    %22 = tpu.memref_slice %arg8[%c1_i32_15, %c0_i32_16] : memref<8x128xf32, #tpu.memory_space<vmem>> -> memref<1x128xf32, #tpu.memory_space<vmem>>
    %23 = tpu.memref_slice %arg10[%c0_i32_12, %c1_i32_13] : memref<2x8x!tpu.dma_semaphore, #tpu.memory_space<semaphore_mem>> -> memref<1x1x!tpu.dma_semaphore, #tpu.memory_space<semaphore_mem>>
    %24 = tpu.memref_squeeze %23 : memref<1x1x!tpu.dma_semaphore, #tpu.memory_space<semaphore_mem>> -> memref<!tpu.dma_semaphore, #tpu.memory_space<semaphore_mem>>
    tpu.enqueue_dma source(%21 : memref<1x128xf32, #tpu.memory_space<any>>) target(%22 : memref<1x128xf32, #tpu.memory_space<vmem>>) target_semaphore(%24 : memref<!tpu.dma_semaphore, #tpu.memory_space<semaphore_mem>>)
    %c1_i32_17 = arith.constant 1 : i32
    %c1_i32_18 = arith.constant 1 : i32
    %c0_i32_19 = arith.constant 0 : i32
    %25 = tpu.memref_slice %arg6[%20, %c0_i32_19] : memref<32x128xf32, #tpu.memory_space<any>> -> memref<1x128xf32, #tpu.memory_space<any>>
    %c1_i32_20 = arith.constant 1 : i32
    %c0_i32_21 = arith.constant 0 : i32
    %26 = tpu.memref_slice %arg9[%c1_i32_20, %c0_i32_21] : memref<8x128xf32, #tpu.memory_space<vmem>> -> memref<1x128xf32, #tpu.memory_space<vmem>>
    %27 = tpu.memref_slice %arg10[%c1_i32_17, %c1_i32_18] : memref<2x8x!tpu.dma_semaphore, #tpu.memory_space<semaphore_mem>> -> memref<1x1x!tpu.dma_semaphore, #tpu.memory_space<semaphore_mem>>
    %28 = tpu.memref_squeeze %27 : memref<1x1x!tpu.dma_semaphore, #tpu.memory_space<semaphore_mem>> -> memref<!tpu.dma_semaphore, #tpu.memory_space<semaphore_mem>>
    tpu.enqueue_dma source(%25 : memref<1x128xf32, #tpu.memory_space<any>>) target(%26 : memref<1x128xf32, #tpu.memory_space<vmem>>) target_semaphore(%28 : memref<!tpu.dma_semaphore, #tpu.memory_space<semaphore_mem>>)
    %c2_i32 = arith.constant 2 : i32
    %29 = arith.addi %0, %c2_i32 : i32
    %30 = arith.index_cast %29 : i32 to index
    %31 = memref.load %arg1[%30] : memref<16xi32, #tpu.memory_space<smem>>
    %c2_i32_22 = arith.constant 2 : i32
    %32 = arith.addi %0, %c2_i32_22 : i32
    %33 = arith.index_cast %32 : i32 to index
    %34 = memref.load %arg2[%33] : memref<16xi32, #tpu.memory_space<smem>>
    %c0_i32_23 = arith.constant 0 : i32
    %c2_i32_24 = arith.constant 2 : i32
    %c0_i32_25 = arith.constant 0 : i32
    %35 = tpu.memref_slice %arg5[%31, %c0_i32_25] : memref<64x128xf32, #tpu.memory_space<any>> -> memref<1x128xf32, #tpu.memory_space<any>>
    %c2_i32_26 = arith.constant 2 : i32
    %c0_i32_27 = arith.constant 0 : i32
    %36 = tpu.memref_slice %arg8[%c2_i32_26, %c0_i32_27] : memref<8x128xf32, #tpu.memory_space<vmem>> -> memref<1x128xf32, #tpu.memory_space<vmem>>
    %37 = tpu.memref_slice %arg10[%c0_i32_23, %c2_i32_24] : memref<2x8x!tpu.dma_semaphore, #tpu.memory_space<semaphore_mem>> -> memref<1x1x!tpu.dma_semaphore, #tpu.memory_space<semaphore_mem>>
    %38 = tpu.memref_squeeze %37 : memref<1x1x!tpu.dma_semaphore, #tpu.memory_space<semaphore_mem>> -> memref<!tpu.dma_semaphore, #tpu.memory_space<semaphore_mem>>
    tpu.enqueue_dma source(%35 : memref<1x128xf32, #tpu.memory_space<any>>) target(%36 : memref<1x128xf32, #tpu.memory_space<vmem>>) target_semaphore(%38 : memref<!tpu.dma_semaphore, #tpu.memory_space<semaphore_mem>>)
    %c1_i32_28 = arith.constant 1 : i32
    %c2_i32_29 = arith.constant 2 : i32
    %c0_i32_30 = arith.constant 0 : i32
    %39 = tpu.memref_slice %arg6[%34, %c0_i32_30] : memref<32x128xf32, #tpu.memory_space<any>> -> memref<1x128xf32, #tpu.memory_space<any>>
    %c2_i32_31 = arith.constant 2 : i32
    %c0_i32_32 = arith.constant 0 : i32
    %40 = tpu.memref_slice %arg9[%c2_i32_31, %c0_i32_32] : memref<8x128xf32, #tpu.memory_space<vmem>> -> memref<1x128xf32, #tpu.memory_space<vmem>>
    %41 = tpu.memref_slice %arg10[%c1_i32_28, %c2_i32_29] : memref<2x8x!tpu.dma_semaphore, #tpu.memory_space<semaphore_mem>> -> memref<1x1x!tpu.dma_semaphore, #tpu.memory_space<semaphore_mem>>
    %42 = tpu.memref_squeeze %41 : memref<1x1x!tpu.dma_semaphore, #tpu.memory_space<semaphore_mem>> -> memref<!tpu.dma_semaphore, #tpu.memory_space<semaphore_mem>>
    tpu.enqueue_dma source(%39 : memref<1x128xf32, #tpu.memory_space<any>>) target(%40 : memref<1x128xf32, #tpu.memory_space<vmem>>) target_semaphore(%42 : memref<!tpu.dma_semaphore, #tpu.memory_space<semaphore_mem>>)
    %c3_i32 = arith.constant 3 : i32
    %43 = arith.addi %0, %c3_i32 : i32
    %44 = arith.index_cast %43 : i32 to index
    %45 = memref.load %arg1[%44] : memref<16xi32, #tpu.memory_space<smem>>
    %c3_i32_33 = arith.constant 3 : i32
    %46 = arith.addi %0, %c3_i32_33 : i32
    %47 = arith.index_cast %46 : i32 to index
    %48 = memref.load %arg2[%47] : memref<16xi32, #tpu.memory_space<smem>>
    %c0_i32_34 = arith.constant 0 : i32
    %c3_i32_35 = arith.constant 3 : i32
    %c0_i32_36 = arith.constant 0 : i32
    %49 = tpu.memref_slice %arg5[%45, %c0_i32_36] : memref<64x128xf32, #tpu.memory_space<any>> -> memref<1x128xf32, #tpu.memory_space<any>>
    %c3_i32_37 = arith.constant 3 : i32
    %c0_i32_38 = arith.constant 0 : i32
    %50 = tpu.memref_slice %arg8[%c3_i32_37, %c0_i32_38] : memref<8x128xf32, #tpu.memory_space<vmem>> -> memref<1x128xf32, #tpu.memory_space<vmem>>
    %51 = tpu.memref_slice %arg10[%c0_i32_34, %c3_i32_35] : memref<2x8x!tpu.dma_semaphore, #tpu.memory_space<semaphore_mem>> -> memref<1x1x!tpu.dma_semaphore, #tpu.memory_space<semaphore_mem>>
    %52 = tpu.memref_squeeze %51 : memref<1x1x!tpu.dma_semaphore, #tpu.memory_space<semaphore_mem>> -> memref<!tpu.dma_semaphore, #tpu.memory_space<semaphore_mem>>
    tpu.enqueue_dma source(%49 : memref<1x128xf32, #tpu.memory_space<any>>) target(%50 : memref<1x128xf32, #tpu.memory_space<vmem>>) target_semaphore(%52 : memref<!tpu.dma_semaphore, #tpu.memory_space<semaphore_mem>>)
    %c1_i32_39 = arith.constant 1 : i32
    %c3_i32_40 = arith.constant 3 : i32
    %c0_i32_41 = arith.constant 0 : i32
    %53 = tpu.memref_slice %arg6[%48, %c0_i32_41] : memref<32x128xf32, #tpu.memory_space<any>> -> memref<1x128xf32, #tpu.memory_space<any>>
    %c3_i32_42 = arith.constant 3 : i32
    %c0_i32_43 = arith.constant 0 : i32
    %54 = tpu.memref_slice %arg9[%c3_i32_42, %c0_i32_43] : memref<8x128xf32, #tpu.memory_space<vmem>> -> memref<1x128xf32, #tpu.memory_space<vmem>>
    %55 = tpu.memref_slice %arg10[%c1_i32_39, %c3_i32_40] : memref<2x8x!tpu.dma_semaphore, #tpu.memory_space<semaphore_mem>> -> memref<1x1x!tpu.dma_semaphore, #tpu.memory_space<semaphore_mem>>
    %56 = tpu.memref_squeeze %55 : memref<1x1x!tpu.dma_semaphore, #tpu.memory_space<semaphore_mem>> -> memref<!tpu.dma_semaphore, #tpu.memory_space<semaphore_mem>>
    tpu.enqueue_dma source(%53 : memref<1x128xf32, #tpu.memory_space<any>>) target(%54 : memref<1x128xf32, #tpu.memory_space<vmem>>) target_semaphore(%56 : memref<!tpu.dma_semaphore, #tpu.memory_space<semaphore_mem>>)
    %c4_i32 = arith.constant 4 : i32
    %57 = arith.addi %0, %c4_i32 : i32
    %58 = arith.index_cast %57 : i32 to index
    %59 = memref.load %arg1[%58] : memref<16xi32, #tpu.memory_space<smem>>
    %c4_i32_44 = arith.constant 4 : i32
    %60 = arith.addi %0, %c4_i32_44 : i32
    %61 = arith.index_cast %60 : i32 to index
    %62 = memref.load %arg2[%61] : memref<16xi32, #tpu.memory_space<smem>>
    %c0_i32_45 = arith.constant 0 : i32
    %c4_i32_46 = arith.constant 4 : i32
    %c0_i32_47 = arith.constant 0 : i32
    %63 = tpu.memref_slice %arg5[%59, %c0_i32_47] : memref<64x128xf32, #tpu.memory_space<any>> -> memref<1x128xf32, #tpu.memory_space<any>>
    %c4_i32_48 = arith.constant 4 : i32
    %c0_i32_49 = arith.constant 0 : i32
    %64 = tpu.memref_slice %arg8[%c4_i32_48, %c0_i32_49] : memref<8x128xf32, #tpu.memory_space<vmem>> -> memref<1x128xf32, #tpu.memory_space<vmem>>
    %65 = tpu.memref_slice %arg10[%c0_i32_45, %c4_i32_46] : memref<2x8x!tpu.dma_semaphore, #tpu.memory_space<semaphore_mem>> -> memref<1x1x!tpu.dma_semaphore, #tpu.memory_space<semaphore_mem>>
    %66 = tpu.memref_squeeze %65 : memref<1x1x!tpu.dma_semaphore, #tpu.memory_space<semaphore_mem>> -> memref<!tpu.dma_semaphore, #tpu.memory_space<semaphore_mem>>
    tpu.enqueue_dma source(%63 : memref<1x128xf32, #tpu.memory_space<any>>) target(%64 : memref<1x128xf32, #tpu.memory_space<vmem>>) target_semaphore(%66 : memref<!tpu.dma_semaphore, #tpu.memory_space<semaphore_mem>>)
    %c1_i32_50 = arith.constant 1 : i32
    %c4_i32_51 = arith.constant 4 : i32
    %c0_i32_52 = arith.constant 0 : i32
    %67 = tpu.memref_slice %arg6[%62, %c0_i32_52] : memref<32x128xf32, #tpu.memory_space<any>> -> memref<1x128xf32, #tpu.memory_space<any>>
    %c4_i32_53 = arith.constant 4 : i32
    %c0_i32_54 = arith.constant 0 : i32
    %68 = tpu.memref_slice %arg9[%c4_i32_53, %c0_i32_54] : memref<8x128xf32, #tpu.memory_space<vmem>> -> memref<1x128xf32, #tpu.memory_space<vmem>>
    %69 = tpu.memref_slice %arg10[%c1_i32_50, %c4_i32_51] : memref<2x8x!tpu.dma_semaphore, #tpu.memory_space<semaphore_mem>> -> memref<1x1x!tpu.dma_semaphore, #tpu.memory_space<semaphore_mem>>
    %70 = tpu.memref_squeeze %69 : memref<1x1x!tpu.dma_semaphore, #tpu.memory_space<semaphore_mem>> -> memref<!tpu.dma_semaphore, #tpu.memory_space<semaphore_mem>>
    tpu.enqueue_dma source(%67 : memref<1x128xf32, #tpu.memory_space<any>>) target(%68 : memref<1x128xf32, #tpu.memory_space<vmem>>) target_semaphore(%70 : memref<!tpu.dma_semaphore, #tpu.memory_space<semaphore_mem>>)
    %c5_i32 = arith.constant 5 : i32
    %71 = arith.addi %0, %c5_i32 : i32
    %72 = arith.index_cast %71 : i32 to index
    %73 = memref.load %arg1[%72] : memref<16xi32, #tpu.memory_space<smem>>
    %c5_i32_55 = arith.constant 5 : i32
    %74 = arith.addi %0, %c5_i32_55 : i32
    %75 = arith.index_cast %74 : i32 to index
    %76 = memref.load %arg2[%75] : memref<16xi32, #tpu.memory_space<smem>>
    %c0_i32_56 = arith.constant 0 : i32
    %c5_i32_57 = arith.constant 5 : i32
    %c0_i32_58 = arith.constant 0 : i32
    %77 = tpu.memref_slice %arg5[%73, %c0_i32_58] : memref<64x128xf32, #tpu.memory_space<any>> -> memref<1x128xf32, #tpu.memory_space<any>>
    %c5_i32_59 = arith.constant 5 : i32
    %c0_i32_60 = arith.constant 0 : i32
    %78 = tpu.memref_slice %arg8[%c5_i32_59, %c0_i32_60] : memref<8x128xf32, #tpu.memory_space<vmem>> -> memref<1x128xf32, #tpu.memory_space<vmem>>
    %79 = tpu.memref_slice %arg10[%c0_i32_56, %c5_i32_57] : memref<2x8x!tpu.dma_semaphore, #tpu.memory_space<semaphore_mem>> -> memref<1x1x!tpu.dma_semaphore, #tpu.memory_space<semaphore_mem>>
    %80 = tpu.memref_squeeze %79 : memref<1x1x!tpu.dma_semaphore, #tpu.memory_space<semaphore_mem>> -> memref<!tpu.dma_semaphore, #tpu.memory_space<semaphore_mem>>
    tpu.enqueue_dma source(%77 : memref<1x128xf32, #tpu.memory_space<any>>) target(%78 : memref<1x128xf32, #tpu.memory_space<vmem>>) target_semaphore(%80 : memref<!tpu.dma_semaphore, #tpu.memory_space<semaphore_mem>>)
    %c1_i32_61 = arith.constant 1 : i32
    %c5_i32_62 = arith.constant 5 : i32
    %c0_i32_63 = arith.constant 0 : i32
    %81 = tpu.memref_slice %arg6[%76, %c0_i32_63] : memref<32x128xf32, #tpu.memory_space<any>> -> memref<1x128xf32, #tpu.memory_space<any>>
    %c5_i32_64 = arith.constant 5 : i32
    %c0_i32_65 = arith.constant 0 : i32
    %82 = tpu.memref_slice %arg9[%c5_i32_64, %c0_i32_65] : memref<8x128xf32, #tpu.memory_space<vmem>> -> memref<1x128xf32, #tpu.memory_space<vmem>>
    %83 = tpu.memref_slice %arg10[%c1_i32_61, %c5_i32_62] : memref<2x8x!tpu.dma_semaphore, #tpu.memory_space<semaphore_mem>> -> memref<1x1x!tpu.dma_semaphore, #tpu.memory_space<semaphore_mem>>
    %84 = tpu.memref_squeeze %83 : memref<1x1x!tpu.dma_semaphore, #tpu.memory_space<semaphore_mem>> -> memref<!tpu.dma_semaphore, #tpu.memory_space<semaphore_mem>>
    tpu.enqueue_dma source(%81 : memref<1x128xf32, #tpu.memory_space<any>>) target(%82 : memref<1x128xf32, #tpu.memory_space<vmem>>) target_semaphore(%84 : memref<!tpu.dma_semaphore, #tpu.memory_space<semaphore_mem>>)
    %c6_i32 = arith.constant 6 : i32
    %85 = arith.addi %0, %c6_i32 : i32
    %86 = arith.index_cast %85 : i32 to index
    %87 = memref.load %arg1[%86] : memref<16xi32, #tpu.memory_space<smem>>
    %c6_i32_66 = arith.constant 6 : i32
    %88 = arith.addi %0, %c6_i32_66 : i32
    %89 = arith.index_cast %88 : i32 to index
    %90 = memref.load %arg2[%89] : memref<16xi32, #tpu.memory_space<smem>>
    %c0_i32_67 = arith.constant 0 : i32
    %c6_i32_68 = arith.constant 6 : i32
    %c0_i32_69 = arith.constant 0 : i32
    %91 = tpu.memref_slice %arg5[%87, %c0_i32_69] : memref<64x128xf32, #tpu.memory_space<any>> -> memref<1x128xf32, #tpu.memory_space<any>>
    %c6_i32_70 = arith.constant 6 : i32
    %c0_i32_71 = arith.constant 0 : i32
    %92 = tpu.memref_slice %arg8[%c6_i32_70, %c0_i32_71] : memref<8x128xf32, #tpu.memory_space<vmem>> -> memref<1x128xf32, #tpu.memory_space<vmem>>
    %93 = tpu.memref_slice %arg10[%c0_i32_67, %c6_i32_68] : memref<2x8x!tpu.dma_semaphore, #tpu.memory_space<semaphore_mem>> -> memref<1x1x!tpu.dma_semaphore, #tpu.memory_space<semaphore_mem>>
    %94 = tpu.memref_squeeze %93 : memref<1x1x!tpu.dma_semaphore, #tpu.memory_space<semaphore_mem>> -> memref<!tpu.dma_semaphore, #tpu.memory_space<semaphore_mem>>
    tpu.enqueue_dma source(%91 : memref<1x128xf32, #tpu.memory_space<any>>) target(%92 : memref<1x128xf32, #tpu.memory_space<vmem>>) target_semaphore(%94 : memref<!tpu.dma_semaphore, #tpu.memory_space<semaphore_mem>>)
    %c1_i32_72 = arith.constant 1 : i32
    %c6_i32_73 = arith.constant 6 : i32
    %c0_i32_74 = arith.constant 0 : i32
    %95 = tpu.memref_slice %arg6[%90, %c0_i32_74] : memref<32x128xf32, #tpu.memory_space<any>> -> memref<1x128xf32, #tpu.memory_space<any>>
    %c6_i32_75 = arith.constant 6 : i32
    %c0_i32_76 = arith.constant 0 : i32
    %96 = tpu.memref_slice %arg9[%c6_i32_75, %c0_i32_76] : memref<8x128xf32, #tpu.memory_space<vmem>> -> memref<1x128xf32, #tpu.memory_space<vmem>>
    %97 = tpu.memref_slice %arg10[%c1_i32_72, %c6_i32_73] : memref<2x8x!tpu.dma_semaphore, #tpu.memory_space<semaphore_mem>> -> memref<1x1x!tpu.dma_semaphore, #tpu.memory_space<semaphore_mem>>
    %98 = tpu.memref_squeeze %97 : memref<1x1x!tpu.dma_semaphore, #tpu.memory_space<semaphore_mem>> -> memref<!tpu.dma_semaphore, #tpu.memory_space<semaphore_mem>>
    tpu.enqueue_dma source(%95 : memref<1x128xf32, #tpu.memory_space<any>>) target(%96 : memref<1x128xf32, #tpu.memory_space<vmem>>) target_semaphore(%98 : memref<!tpu.dma_semaphore, #tpu.memory_space<semaphore_mem>>)
    %c7_i32 = arith.constant 7 : i32
    %99 = arith.addi %0, %c7_i32 : i32
    %100 = arith.index_cast %99 : i32 to index
    %101 = memref.load %arg1[%100] : memref<16xi32, #tpu.memory_space<smem>>
    %c7_i32_77 = arith.constant 7 : i32
    %102 = arith.addi %0, %c7_i32_77 : i32
    %103 = arith.index_cast %102 : i32 to index
    %104 = memref.load %arg2[%103] : memref<16xi32, #tpu.memory_space<smem>>
    %c0_i32_78 = arith.constant 0 : i32
    %c7_i32_79 = arith.constant 7 : i32
    %c0_i32_80 = arith.constant 0 : i32
    %105 = tpu.memref_slice %arg5[%101, %c0_i32_80] : memref<64x128xf32, #tpu.memory_space<any>> -> memref<1x128xf32, #tpu.memory_space<any>>
    %c7_i32_81 = arith.constant 7 : i32
    %c0_i32_82 = arith.constant 0 : i32
    %106 = tpu.memref_slice %arg8[%c7_i32_81, %c0_i32_82] : memref<8x128xf32, #tpu.memory_space<vmem>> -> memref<1x128xf32, #tpu.memory_space<vmem>>
    %107 = tpu.memref_slice %arg10[%c0_i32_78, %c7_i32_79] : memref<2x8x!tpu.dma_semaphore, #tpu.memory_space<semaphore_mem>> -> memref<1x1x!tpu.dma_semaphore, #tpu.memory_space<semaphore_mem>>
    %108 = tpu.memref_squeeze %107 : memref<1x1x!tpu.dma_semaphore, #tpu.memory_space<semaphore_mem>> -> memref<!tpu.dma_semaphore, #tpu.memory_space<semaphore_mem>>
    tpu.enqueue_dma source(%105 : memref<1x128xf32, #tpu.memory_space<any>>) target(%106 : memref<1x128xf32, #tpu.memory_space<vmem>>) target_semaphore(%108 : memref<!tpu.dma_semaphore, #tpu.memory_space<semaphore_mem>>)
    %c1_i32_83 = arith.constant 1 : i32
    %c7_i32_84 = arith.constant 7 : i32
    %c0_i32_85 = arith.constant 0 : i32
    %109 = tpu.memref_slice %arg6[%104, %c0_i32_85] : memref<32x128xf32, #tpu.memory_space<any>> -> memref<1x128xf32, #tpu.memory_space<any>>
    %c7_i32_86 = arith.constant 7 : i32
    %c0_i32_87 = arith.constant 0 : i32
    %110 = tpu.memref_slice %arg9[%c7_i32_86, %c0_i32_87] : memref<8x128xf32, #tpu.memory_space<vmem>> -> memref<1x128xf32, #tpu.memory_space<vmem>>
    %111 = tpu.memref_slice %arg10[%c1_i32_83, %c7_i32_84] : memref<2x8x!tpu.dma_semaphore, #tpu.memory_space<semaphore_mem>> -> memref<1x1x!tpu.dma_semaphore, #tpu.memory_space<semaphore_mem>>
    %112 = tpu.memref_squeeze %111 : memref<1x1x!tpu.dma_semaphore, #tpu.memory_space<semaphore_mem>> -> memref<!tpu.dma_semaphore, #tpu.memory_space<semaphore_mem>>
    tpu.enqueue_dma source(%109 : memref<1x128xf32, #tpu.memory_space<any>>) target(%110 : memref<1x128xf32, #tpu.memory_space<vmem>>) target_semaphore(%112 : memref<!tpu.dma_semaphore, #tpu.memory_space<semaphore_mem>>)
    %c0_i32_88 = arith.constant 0 : i32
    %c0_i32_89 = arith.constant 0 : i32
    %c0_i32_90 = arith.constant 0 : i32
    %113 = tpu.memref_slice %arg5[%3, %c0_i32_90] : memref<64x128xf32, #tpu.memory_space<any>> -> memref<1x128xf32, #tpu.memory_space<any>>
    %c0_i32_91 = arith.constant 0 : i32
    %c0_i32_92 = arith.constant 0 : i32
    %114 = tpu.memref_slice %arg8[%c0_i32_91, %c0_i32_92] : memref<8x128xf32, #tpu.memory_space<vmem>> -> memref<1x128xf32, #tpu.memory_space<vmem>>
    %115 = tpu.memref_slice %arg10[%c0_i32_88, %c0_i32_89] : memref<2x8x!tpu.dma_semaphore, #tpu.memory_space<semaphore_mem>> -> memref<1x1x!tpu.dma_semaphore, #tpu.memory_space<semaphore_mem>>
    %116 = tpu.memref_squeeze %115 : memref<1x1x!tpu.dma_semaphore, #tpu.memory_space<semaphore_mem>> -> memref<!tpu.dma_semaphore, #tpu.memory_space<semaphore_mem>>
    tpu.wait_dma2 semaphore(%116 : memref<!tpu.dma_semaphore, #tpu.memory_space<semaphore_mem>>) src(%113 : memref<1x128xf32, #tpu.memory_space<any>>) dst(%114 : memref<1x128xf32, #tpu.memory_space<vmem>>)
    %c1_i32_93 = arith.constant 1 : i32
    %c0_i32_94 = arith.constant 0 : i32
    %c0_i32_95 = arith.constant 0 : i32
    %117 = tpu.memref_slice %arg6[%6, %c0_i32_95] : memref<32x128xf32, #tpu.memory_space<any>> -> memref<1x128xf32, #tpu.memory_space<any>>
    %c0_i32_96 = arith.constant 0 : i32
    %c0_i32_97 = arith.constant 0 : i32
    %118 = tpu.memref_slice %arg9[%c0_i32_96, %c0_i32_97] : memref<8x128xf32, #tpu.memory_space<vmem>> -> memref<1x128xf32, #tpu.memory_space<vmem>>
    %119 = tpu.memref_slice %arg10[%c1_i32_93, %c0_i32_94] : memref<2x8x!tpu.dma_semaphore, #tpu.memory_space<semaphore_mem>> -> memref<1x1x!tpu.dma_semaphore, #tpu.memory_space<semaphore_mem>>
    %120 = tpu.memref_squeeze %119 : memref<1x1x!tpu.dma_semaphore, #tpu.memory_space<semaphore_mem>> -> memref<!tpu.dma_semaphore, #tpu.memory_space<semaphore_mem>>
    tpu.wait_dma2 semaphore(%120 : memref<!tpu.dma_semaphore, #tpu.memory_space<semaphore_mem>>) src(%117 : memref<1x128xf32, #tpu.memory_space<any>>) dst(%118 : memref<1x128xf32, #tpu.memory_space<vmem>>)
    %c0_i32_98 = arith.constant 0 : i32
    %c1_i32_99 = arith.constant 1 : i32
    %c0_i32_100 = arith.constant 0 : i32
    %121 = tpu.memref_slice %arg5[%17, %c0_i32_100] : memref<64x128xf32, #tpu.memory_space<any>> -> memref<1x128xf32, #tpu.memory_space<any>>
    %c1_i32_101 = arith.constant 1 : i32
    %c0_i32_102 = arith.constant 0 : i32
    %122 = tpu.memref_slice %arg8[%c1_i32_101, %c0_i32_102] : memref<8x128xf32, #tpu.memory_space<vmem>> -> memref<1x128xf32, #tpu.memory_space<vmem>>
    %123 = tpu.memref_slice %arg10[%c0_i32_98, %c1_i32_99] : memref<2x8x!tpu.dma_semaphore, #tpu.memory_space<semaphore_mem>> -> memref<1x1x!tpu.dma_semaphore, #tpu.memory_space<semaphore_mem>>
    %124 = tpu.memref_squeeze %123 : memref<1x1x!tpu.dma_semaphore, #tpu.memory_space<semaphore_mem>> -> memref<!tpu.dma_semaphore, #tpu.memory_space<semaphore_mem>>
    tpu.wait_dma2 semaphore(%124 : memref<!tpu.dma_semaphore, #tpu.memory_space<semaphore_mem>>) src(%121 : memref<1x128xf32, #tpu.memory_space<any>>) dst(%122 : memref<1x128xf32, #tpu.memory_space<vmem>>)
    %c1_i32_103 = arith.constant 1 : i32
    %c1_i32_104 = arith.constant 1 : i32
    %c0_i32_105 = arith.constant 0 : i32
    %125 = tpu.memref_slice %arg6[%20, %c0_i32_105] : memref<32x128xf32, #tpu.memory_space<any>> -> memref<1x128xf32, #tpu.memory_space<any>>
    %c1_i32_106 = arith.constant 1 : i32
    %c0_i32_107 = arith.constant 0 : i32
    %126 = tpu.memref_slice %arg9[%c1_i32_106, %c0_i32_107] : memref<8x128xf32, #tpu.memory_space<vmem>> -> memref<1x128xf32, #tpu.memory_space<vmem>>
    %127 = tpu.memref_slice %arg10[%c1_i32_103, %c1_i32_104] : memref<2x8x!tpu.dma_semaphore, #tpu.memory_space<semaphore_mem>> -> memref<1x1x!tpu.dma_semaphore, #tpu.memory_space<semaphore_mem>>
    %128 = tpu.memref_squeeze %127 : memref<1x1x!tpu.dma_semaphore, #tpu.memory_space<semaphore_mem>> -> memref<!tpu.dma_semaphore, #tpu.memory_space<semaphore_mem>>
    tpu.wait_dma2 semaphore(%128 : memref<!tpu.dma_semaphore, #tpu.memory_space<semaphore_mem>>) src(%125 : memref<1x128xf32, #tpu.memory_space<any>>) dst(%126 : memref<1x128xf32, #tpu.memory_space<vmem>>)
    %c0_i32_108 = arith.constant 0 : i32
    %c2_i32_109 = arith.constant 2 : i32
    %c0_i32_110 = arith.constant 0 : i32
    %129 = tpu.memref_slice %arg5[%31, %c0_i32_110] : memref<64x128xf32, #tpu.memory_space<any>> -> memref<1x128xf32, #tpu.memory_space<any>>
    %c2_i32_111 = arith.constant 2 : i32
    %c0_i32_112 = arith.constant 0 : i32
    %130 = tpu.memref_slice %arg8[%c2_i32_111, %c0_i32_112] : memref<8x128xf32, #tpu.memory_space<vmem>> -> memref<1x128xf32, #tpu.memory_space<vmem>>
    %131 = tpu.memref_slice %arg10[%c0_i32_108, %c2_i32_109] : memref<2x8x!tpu.dma_semaphore, #tpu.memory_space<semaphore_mem>> -> memref<1x1x!tpu.dma_semaphore, #tpu.memory_space<semaphore_mem>>
    %132 = tpu.memref_squeeze %131 : memref<1x1x!tpu.dma_semaphore, #tpu.memory_space<semaphore_mem>> -> memref<!tpu.dma_semaphore, #tpu.memory_space<semaphore_mem>>
    tpu.wait_dma2 semaphore(%132 : memref<!tpu.dma_semaphore, #tpu.memory_space<semaphore_mem>>) src(%129 : memref<1x128xf32, #tpu.memory_space<any>>) dst(%130 : memref<1x128xf32, #tpu.memory_space<vmem>>)
    %c1_i32_113 = arith.constant 1 : i32
    %c2_i32_114 = arith.constant 2 : i32
    %c0_i32_115 = arith.constant 0 : i32
    %133 = tpu.memref_slice %arg6[%34, %c0_i32_115] : memref<32x128xf32, #tpu.memory_space<any>> -> memref<1x128xf32, #tpu.memory_space<any>>
    %c2_i32_116 = arith.constant 2 : i32
    %c0_i32_117 = arith.constant 0 : i32
    %134 = tpu.memref_slice %arg9[%c2_i32_116, %c0_i32_117] : memref<8x128xf32, #tpu.memory_space<vmem>> -> memref<1x128xf32, #tpu.memory_space<vmem>>
    %135 = tpu.memref_slice %arg10[%c1_i32_113, %c2_i32_114] : memref<2x8x!tpu.dma_semaphore, #tpu.memory_space<semaphore_mem>> -> memref<1x1x!tpu.dma_semaphore, #tpu.memory_space<semaphore_mem>>
    %136 = tpu.memref_squeeze %135 : memref<1x1x!tpu.dma_semaphore, #tpu.memory_space<semaphore_mem>> -> memref<!tpu.dma_semaphore, #tpu.memory_space<semaphore_mem>>
    tpu.wait_dma2 semaphore(%136 : memref<!tpu.dma_semaphore, #tpu.memory_space<semaphore_mem>>) src(%133 : memref<1x128xf32, #tpu.memory_space<any>>) dst(%134 : memref<1x128xf32, #tpu.memory_space<vmem>>)
    %c0_i32_118 = arith.constant 0 : i32
    %c3_i32_119 = arith.constant 3 : i32
    %c0_i32_120 = arith.constant 0 : i32
    %137 = tpu.memref_slice %arg5[%45, %c0_i32_120] : memref<64x128xf32, #tpu.memory_space<any>> -> memref<1x128xf32, #tpu.memory_space<any>>
    %c3_i32_121 = arith.constant 3 : i32
    %c0_i32_122 = arith.constant 0 : i32
    %138 = tpu.memref_slice %arg8[%c3_i32_121, %c0_i32_122] : memref<8x128xf32, #tpu.memory_space<vmem>> -> memref<1x128xf32, #tpu.memory_space<vmem>>
    %139 = tpu.memref_slice %arg10[%c0_i32_118, %c3_i32_119] : memref<2x8x!tpu.dma_semaphore, #tpu.memory_space<semaphore_mem>> -> memref<1x1x!tpu.dma_semaphore, #tpu.memory_space<semaphore_mem>>
    %140 = tpu.memref_squeeze %139 : memref<1x1x!tpu.dma_semaphore, #tpu.memory_space<semaphore_mem>> -> memref<!tpu.dma_semaphore, #tpu.memory_space<semaphore_mem>>
    tpu.wait_dma2 semaphore(%140 : memref<!tpu.dma_semaphore, #tpu.memory_space<semaphore_mem>>) src(%137 : memref<1x128xf32, #tpu.memory_space<any>>) dst(%138 : memref<1x128xf32, #tpu.memory_space<vmem>>)
    %c1_i32_123 = arith.constant 1 : i32
    %c3_i32_124 = arith.constant 3 : i32
    %c0_i32_125 = arith.constant 0 : i32
    %141 = tpu.memref_slice %arg6[%48, %c0_i32_125] : memref<32x128xf32, #tpu.memory_space<any>> -> memref<1x128xf32, #tpu.memory_space<any>>
    %c3_i32_126 = arith.constant 3 : i32
    %c0_i32_127 = arith.constant 0 : i32
    %142 = tpu.memref_slice %arg9[%c3_i32_126, %c0_i32_127] : memref<8x128xf32, #tpu.memory_space<vmem>> -> memref<1x128xf32, #tpu.memory_space<vmem>>
    %143 = tpu.memref_slice %arg10[%c1_i32_123, %c3_i32_124] : memref<2x8x!tpu.dma_semaphore, #tpu.memory_space<semaphore_mem>> -> memref<1x1x!tpu.dma_semaphore, #tpu.memory_space<semaphore_mem>>
    %144 = tpu.memref_squeeze %143 : memref<1x1x!tpu.dma_semaphore, #tpu.memory_space<semaphore_mem>> -> memref<!tpu.dma_semaphore, #tpu.memory_space<semaphore_mem>>
    tpu.wait_dma2 semaphore(%144 : memref<!tpu.dma_semaphore, #tpu.memory_space<semaphore_mem>>) src(%141 : memref<1x128xf32, #tpu.memory_space<any>>) dst(%142 : memref<1x128xf32, #tpu.memory_space<vmem>>)
    %c0_i32_128 = arith.constant 0 : i32
    %c4_i32_129 = arith.constant 4 : i32
    %c0_i32_130 = arith.constant 0 : i32
    %145 = tpu.memref_slice %arg5[%59, %c0_i32_130] : memref<64x128xf32, #tpu.memory_space<any>> -> memref<1x128xf32, #tpu.memory_space<any>>
    %c4_i32_131 = arith.constant 4 : i32
    %c0_i32_132 = arith.constant 0 : i32
    %146 = tpu.memref_slice %arg8[%c4_i32_131, %c0_i32_132] : memref<8x128xf32, #tpu.memory_space<vmem>> -> memref<1x128xf32, #tpu.memory_space<vmem>>
    %147 = tpu.memref_slice %arg10[%c0_i32_128, %c4_i32_129] : memref<2x8x!tpu.dma_semaphore, #tpu.memory_space<semaphore_mem>> -> memref<1x1x!tpu.dma_semaphore, #tpu.memory_space<semaphore_mem>>
    %148 = tpu.memref_squeeze %147 : memref<1x1x!tpu.dma_semaphore, #tpu.memory_space<semaphore_mem>> -> memref<!tpu.dma_semaphore, #tpu.memory_space<semaphore_mem>>
    tpu.wait_dma2 semaphore(%148 : memref<!tpu.dma_semaphore, #tpu.memory_space<semaphore_mem>>) src(%145 : memref<1x128xf32, #tpu.memory_space<any>>) dst(%146 : memref<1x128xf32, #tpu.memory_space<vmem>>)
    %c1_i32_133 = arith.constant 1 : i32
    %c4_i32_134 = arith.constant 4 : i32
    %c0_i32_135 = arith.constant 0 : i32
    %149 = tpu.memref_slice %arg6[%62, %c0_i32_135] : memref<32x128xf32, #tpu.memory_space<any>> -> memref<1x128xf32, #tpu.memory_space<any>>
    %c4_i32_136 = arith.constant 4 : i32
    %c0_i32_137 = arith.constant 0 : i32
    %150 = tpu.memref_slice %arg9[%c4_i32_136, %c0_i32_137] : memref<8x128xf32, #tpu.memory_space<vmem>> -> memref<1x128xf32, #tpu.memory_space<vmem>>
    %151 = tpu.memref_slice %arg10[%c1_i32_133, %c4_i32_134] : memref<2x8x!tpu.dma_semaphore, #tpu.memory_space<semaphore_mem>> -> memref<1x1x!tpu.dma_semaphore, #tpu.memory_space<semaphore_mem>>
    %152 = tpu.memref_squeeze %151 : memref<1x1x!tpu.dma_semaphore, #tpu.memory_space<semaphore_mem>> -> memref<!tpu.dma_semaphore, #tpu.memory_space<semaphore_mem>>
    tpu.wait_dma2 semaphore(%152 : memref<!tpu.dma_semaphore, #tpu.memory_space<semaphore_mem>>) src(%149 : memref<1x128xf32, #tpu.memory_space<any>>) dst(%150 : memref<1x128xf32, #tpu.memory_space<vmem>>)
    %c0_i32_138 = arith.constant 0 : i32
    %c5_i32_139 = arith.constant 5 : i32
    %c0_i32_140 = arith.constant 0 : i32
    %153 = tpu.memref_slice %arg5[%73, %c0_i32_140] : memref<64x128xf32, #tpu.memory_space<any>> -> memref<1x128xf32, #tpu.memory_space<any>>
    %c5_i32_141 = arith.constant 5 : i32
    %c0_i32_142 = arith.constant 0 : i32
    %154 = tpu.memref_slice %arg8[%c5_i32_141, %c0_i32_142] : memref<8x128xf32, #tpu.memory_space<vmem>> -> memref<1x128xf32, #tpu.memory_space<vmem>>
    %155 = tpu.memref_slice %arg10[%c0_i32_138, %c5_i32_139] : memref<2x8x!tpu.dma_semaphore, #tpu.memory_space<semaphore_mem>> -> memref<1x1x!tpu.dma_semaphore, #tpu.memory_space<semaphore_mem>>
    %156 = tpu.memref_squeeze %155 : memref<1x1x!tpu.dma_semaphore, #tpu.memory_space<semaphore_mem>> -> memref<!tpu.dma_semaphore, #tpu.memory_space<semaphore_mem>>
    tpu.wait_dma2 semaphore(%156 : memref<!tpu.dma_semaphore, #tpu.memory_space<semaphore_mem>>) src(%153 : memref<1x128xf32, #tpu.memory_space<any>>) dst(%154 : memref<1x128xf32, #tpu.memory_space<vmem>>)
    %c1_i32_143 = arith.constant 1 : i32
    %c5_i32_144 = arith.constant 5 : i32
    %c0_i32_145 = arith.constant 0 : i32
    %157 = tpu.memref_slice %arg6[%76, %c0_i32_145] : memref<32x128xf32, #tpu.memory_space<any>> -> memref<1x128xf32, #tpu.memory_space<any>>
    %c5_i32_146 = arith.constant 5 : i32
    %c0_i32_147 = arith.constant 0 : i32
    %158 = tpu.memref_slice %arg9[%c5_i32_146, %c0_i32_147] : memref<8x128xf32, #tpu.memory_space<vmem>> -> memref<1x128xf32, #tpu.memory_space<vmem>>
    %159 = tpu.memref_slice %arg10[%c1_i32_143, %c5_i32_144] : memref<2x8x!tpu.dma_semaphore, #tpu.memory_space<semaphore_mem>> -> memref<1x1x!tpu.dma_semaphore, #tpu.memory_space<semaphore_mem>>
    %160 = tpu.memref_squeeze %159 : memref<1x1x!tpu.dma_semaphore, #tpu.memory_space<semaphore_mem>> -> memref<!tpu.dma_semaphore, #tpu.memory_space<semaphore_mem>>
    tpu.wait_dma2 semaphore(%160 : memref<!tpu.dma_semaphore, #tpu.memory_space<semaphore_mem>>) src(%157 : memref<1x128xf32, #tpu.memory_space<any>>) dst(%158 : memref<1x128xf32, #tpu.memory_space<vmem>>)
    %c0_i32_148 = arith.constant 0 : i32
    %c6_i32_149 = arith.constant 6 : i32
    %c0_i32_150 = arith.constant 0 : i32
    %161 = tpu.memref_slice %arg5[%87, %c0_i32_150] : memref<64x128xf32, #tpu.memory_space<any>> -> memref<1x128xf32, #tpu.memory_space<any>>
    %c6_i32_151 = arith.constant 6 : i32
    %c0_i32_152 = arith.constant 0 : i32
    %162 = tpu.memref_slice %arg8[%c6_i32_151, %c0_i32_152] : memref<8x128xf32, #tpu.memory_space<vmem>> -> memref<1x128xf32, #tpu.memory_space<vmem>>
    %163 = tpu.memref_slice %arg10[%c0_i32_148, %c6_i32_149] : memref<2x8x!tpu.dma_semaphore, #tpu.memory_space<semaphore_mem>> -> memref<1x1x!tpu.dma_semaphore, #tpu.memory_space<semaphore_mem>>
    %164 = tpu.memref_squeeze %163 : memref<1x1x!tpu.dma_semaphore, #tpu.memory_space<semaphore_mem>> -> memref<!tpu.dma_semaphore, #tpu.memory_space<semaphore_mem>>
    tpu.wait_dma2 semaphore(%164 : memref<!tpu.dma_semaphore, #tpu.memory_space<semaphore_mem>>) src(%161 : memref<1x128xf32, #tpu.memory_space<any>>) dst(%162 : memref<1x128xf32, #tpu.memory_space<vmem>>)
    %c1_i32_153 = arith.constant 1 : i32
    %c6_i32_154 = arith.constant 6 : i32
    %c0_i32_155 = arith.constant 0 : i32
    %165 = tpu.memref_slice %arg6[%90, %c0_i32_155] : memref<32x128xf32, #tpu.memory_space<any>> -> memref<1x128xf32, #tpu.memory_space<any>>
    %c6_i32_156 = arith.constant 6 : i32
    %c0_i32_157 = arith.constant 0 : i32
    %166 = tpu.memref_slice %arg9[%c6_i32_156, %c0_i32_157] : memref<8x128xf32, #tpu.memory_space<vmem>> -> memref<1x128xf32, #tpu.memory_space<vmem>>
    %167 = tpu.memref_slice %arg10[%c1_i32_153, %c6_i32_154] : memref<2x8x!tpu.dma_semaphore, #tpu.memory_space<semaphore_mem>> -> memref<1x1x!tpu.dma_semaphore, #tpu.memory_space<semaphore_mem>>
    %168 = tpu.memref_squeeze %167 : memref<1x1x!tpu.dma_semaphore, #tpu.memory_space<semaphore_mem>> -> memref<!tpu.dma_semaphore, #tpu.memory_space<semaphore_mem>>
    tpu.wait_dma2 semaphore(%168 : memref<!tpu.dma_semaphore, #tpu.memory_space<semaphore_mem>>) src(%165 : memref<1x128xf32, #tpu.memory_space<any>>) dst(%166 : memref<1x128xf32, #tpu.memory_space<vmem>>)
    %c0_i32_158 = arith.constant 0 : i32
    %c7_i32_159 = arith.constant 7 : i32
    %c0_i32_160 = arith.constant 0 : i32
    %169 = tpu.memref_slice %arg5[%101, %c0_i32_160] : memref<64x128xf32, #tpu.memory_space<any>> -> memref<1x128xf32, #tpu.memory_space<any>>
    %c7_i32_161 = arith.constant 7 : i32
    %c0_i32_162 = arith.constant 0 : i32
    %170 = tpu.memref_slice %arg8[%c7_i32_161, %c0_i32_162] : memref<8x128xf32, #tpu.memory_space<vmem>> -> memref<1x128xf32, #tpu.memory_space<vmem>>
    %171 = tpu.memref_slice %arg10[%c0_i32_158, %c7_i32_159] : memref<2x8x!tpu.dma_semaphore, #tpu.memory_space<semaphore_mem>> -> memref<1x1x!tpu.dma_semaphore, #tpu.memory_space<semaphore_mem>>
    %172 = tpu.memref_squeeze %171 : memref<1x1x!tpu.dma_semaphore, #tpu.memory_space<semaphore_mem>> -> memref<!tpu.dma_semaphore, #tpu.memory_space<semaphore_mem>>
    tpu.wait_dma2 semaphore(%172 : memref<!tpu.dma_semaphore, #tpu.memory_space<semaphore_mem>>) src(%169 : memref<1x128xf32, #tpu.memory_space<any>>) dst(%170 : memref<1x128xf32, #tpu.memory_space<vmem>>)
    %c1_i32_163 = arith.constant 1 : i32
    %c7_i32_164 = arith.constant 7 : i32
    %c0_i32_165 = arith.constant 0 : i32
    %173 = tpu.memref_slice %arg6[%104, %c0_i32_165] : memref<32x128xf32, #tpu.memory_space<any>> -> memref<1x128xf32, #tpu.memory_space<any>>
    %c7_i32_166 = arith.constant 7 : i32
    %c0_i32_167 = arith.constant 0 : i32
    %174 = tpu.memref_slice %arg9[%c7_i32_166, %c0_i32_167] : memref<8x128xf32, #tpu.memory_space<vmem>> -> memref<1x128xf32, #tpu.memory_space<vmem>>
    %175 = tpu.memref_slice %arg10[%c1_i32_163, %c7_i32_164] : memref<2x8x!tpu.dma_semaphore, #tpu.memory_space<semaphore_mem>> -> memref<1x1x!tpu.dma_semaphore, #tpu.memory_space<semaphore_mem>>
    %176 = tpu.memref_squeeze %175 : memref<1x1x!tpu.dma_semaphore, #tpu.memory_space<semaphore_mem>> -> memref<!tpu.dma_semaphore, #tpu.memory_space<semaphore_mem>>
    tpu.wait_dma2 semaphore(%176 : memref<!tpu.dma_semaphore, #tpu.memory_space<semaphore_mem>>) src(%173 : memref<1x128xf32, #tpu.memory_space<any>>) dst(%174 : memref<1x128xf32, #tpu.memory_space<vmem>>)
    %c0 = arith.constant 0 : index
    %c0_168 = arith.constant 0 : index
    %177 = vector.load %arg3[%c0, %c0_168] : memref<8x1xi32, #tpu.memory_space<vmem>>, vector<8x1xi32>
    %c0_169 = arith.constant 0 : index
    %c0_170 = arith.constant 0 : index
    %178 = vector.load %arg4[%c0_169, %c0_170] : memref<2x128xf32, #tpu.memory_space<vmem>>, vector<1x128xf32>
    %c1 = arith.constant 1 : index
    %c0_171 = arith.constant 0 : index
    %179 = vector.load %arg4[%c1, %c0_171] : memref<2x128xf32, #tpu.memory_space<vmem>>, vector<1x128xf32>
    %c0_i32_172 = arith.constant 0 : i32
    %180 = vector.broadcast %c0_i32_172 : i32 to vector<8x1xi32>
    %181 = arith.cmpi eq, %177, %180 : vector<8x1xi32>
    %182 = vector.shape_cast %181 : vector<8x1xi1> to vector<8x1xi1>
    %183 = vector.broadcast %182 : vector<8x1xi1> to vector<8x128xi1>
    %184 = vector.shape_cast %178 : vector<1x128xf32> to vector<1x128xf32>
    %185 = vector.broadcast %184 : vector<1x128xf32> to vector<8x128xf32>
    %186 = vector.shape_cast %179 : vector<1x128xf32> to vector<1x128xf32>
    %187 = vector.broadcast %186 : vector<1x128xf32> to vector<8x128xf32>
    %188 = arith.select %183, %185, %187 : vector<8x128xi1>, vector<8x128xf32>
    %c0_173 = arith.constant 0 : index
    %c0_174 = arith.constant 0 : index
    %189 = vector.load %arg8[%c0_173, %c0_174] : memref<8x128xf32, #tpu.memory_space<vmem>>, vector<8x128xf32>
    %c0_175 = arith.constant 0 : index
    %c0_176 = arith.constant 0 : index
    %190 = vector.load %arg9[%c0_175, %c0_176] : memref<8x128xf32, #tpu.memory_space<vmem>>, vector<8x128xf32>
    %191 = arith.addf %189, %190 : vector<8x128xf32>
    %192 = arith.addf %191, %188 : vector<8x128xf32>
    %c0_177 = arith.constant 0 : index
    %c0_178 = arith.constant 0 : index
    %193 = vector.load %arg7[%c0_177, %c0_178] : memref<8x128xf32, #tpu.memory_space<vmem>>, vector<8x128xf32>
    tpu.vector_store %arg7[%c0_177, %c0_178], %192 {strides = array<i32>} : memref<8x128xf32, #tpu.memory_space<vmem>>, vector<8x128xf32>,
    return
  }
  func.func @transform_0(%arg0: i32, %arg1: memref<16xi32, #tpu.memory_space<smem>>, %arg2: memref<16xi32, #tpu.memory_space<smem>>) -> (i32, i32) {
    %c0_i32 = arith.constant 0 : i32
    %c0_i32_0 = arith.constant 0 : i32
    return %arg0, %c0_i32 : i32, i32
  }
  func.func @transform_1(%arg0: i32, %arg1: memref<16xi32, #tpu.memory_space<smem>>, %arg2: memref<16xi32, #tpu.memory_space<smem>>) -> (i32, i32) {
    %c0_i32 = arith.constant 0 : i32
    %c0_i32_0 = arith.constant 0 : i32
    %c0_i32_1 = arith.constant 0 : i32
    return %c0_i32, %c0_i32_0 : i32, i32
  }
  func.func @transform_4(%arg0: i32, %arg1: memref<16xi32, #tpu.memory_space<smem>>, %arg2: memref<16xi32, #tpu.memory_space<smem>>) -> (i32, i32) {
    %c0_i32 = arith.constant 0 : i32
    %c0_i32_0 = arith.constant 0 : i32
    return %arg0, %c0_i32 : i32, i32
  }
}

</mosaic_0001>

<llo_original>
// kernel: tpu_custom_call.1
$region0: #{tpu_custom_call.1}
  #allocation0 [shape = 'u32[]', space=smem, size = 0x4, offset = 0x4, fixed_abs, tag = 'smem constant byte address 0x4 - core index']
  #allocation1 [shape = 'u32[72,128]{1,0:T(1,128)}', space=vmem, size = 0x9000, scoped, tag = 'internal scratch']
  #allocation2 [shape = 'f32[8,128]{1,0:T(8,128)}', space=vmem, size = 0x1000, scoped, tag = 'scratch operand']
  #allocation3 [shape = 'f32[8,128]{1,0:T(8,128)}', space=vmem, size = 0x1000, scoped, tag = 'scratch operand']
  #allocation4 [shape = 's32[16]{0}', space=sflag, size = 0x40, scoped, tag = 'scratch operand']
  #allocation5 [shape = 's32[1]{0}', space=sflag, size = 0x4, scoped, tag = 'scoped memory for tpu_custom_call.1']
  #allocation6 [shape = 'u8[512]{0}', space=smem, size = 0x200, scoped, tag = 'prefetched SMEM operand 0']
  #allocation7 [shape = 'u8[512]{0}', space=smem, size = 0x200, scoped, tag = 'prefetched SMEM operand 1']
  #allocation10 [shape = 's32[]', space=sflag, size = 0x4, offset = 0, fixed_abs, tag = 'sflag constant byte address 0x0 - dummy sync flag']
  #allocation11 [shape = 's32[]', space=sflag, size = 0x4, offset = 0, fixed_abs, tag = 'sflag constant byte address 0x0 - dummy sync flag']
  #allocation12 [shape = 'u32[]', space=smem, size = 0x4, offset = 0x44, fixed_abs, tag = 'smem constant byte address 0x44 - assertion arg 0']
  #allocation13 [shape = 'u32[]', space=smem, size = 0x4, offset = 0x48, fixed_abs, tag = 'smem constant byte address 0x48 - assertion arg 1']
  #allocation14 [shape = 's32[]', space=sflag, size = 0x4, offset = 0, fixed_abs, tag = 'sflag constant byte address 0x0 - dummy sync flag']
  #allocation15 [shape = 's32[]', space=sflag, size = 0x4, offset = 0, fixed_abs, tag = 'sflag constant byte address 0x0 - dummy sync flag']
  #allocation16 [shape = 's32[]', space=sflag, size = 0x4, offset = 0, fixed_abs, tag = 'sflag constant byte address 0x0 - dummy sync flag']
  #allocation17 [shape = 's32[]', space=sflag, size = 0x4, offset = 0, fixed_abs, tag = 'sflag constant byte address 0x0 - dummy sync flag']
  #allocation18 [shape = 's32[]', space=sflag, size = 0x4, offset = 0, fixed_abs, tag = 'sflag constant byte address 0x0 - dummy sync flag']
  #allocation19 [shape = 's32[]', space=sflag, size = 0x4, offset = 0, fixed_abs, tag = 'sflag constant byte address 0x0 - dummy sync flag']
  #allocation20 [shape = 's32[]', space=sflag, size = 0x4, offset = 0, fixed_abs, tag = 'sflag constant byte address 0x0 - dummy sync flag']
  #allocation21 [shape = 's32[]', space=sflag, size = 0x4, offset = 0, fixed_abs, tag = 'sflag constant byte address 0x0 - dummy sync flag']
  #allocation22 [shape = 's32[]', space=sflag, size = 0x4, offset = 0, fixed_abs, tag = 'sflag constant byte address 0x0 - dummy sync flag']
  #allocation23 [shape = 's32[]', space=sflag, size = 0x4, offset = 0, fixed_abs, tag = 'sflag constant byte address 0x0 - dummy sync flag']
  #allocation24 [shape = 's32[]', space=sflag, size = 0x4, offset = 0, fixed_abs, tag = 'sflag constant byte address 0x0 - dummy sync flag']
  #allocation25 [shape = 's32[]', space=sflag, size = 0x4, offset = 0, fixed_abs, tag = 'sflag constant byte address 0x0 - dummy sync flag']
  #allocation26 [shape = 's32[]', space=sflag, size = 0x4, offset = 0, fixed_abs, tag = 'sflag constant byte address 0x0 - dummy sync flag']
  #allocation27 [shape = 's32[]', space=sflag, size = 0x4, offset = 0, fixed_abs, tag = 'sflag constant byte address 0x0 - dummy sync flag']
  #allocation28 [shape = 's32[]', space=sflag, size = 0x4, offset = 0, fixed_abs, tag = 'sflag constant byte address 0x0 - dummy sync flag']
  #allocation29 [shape = 's32[]', space=sflag, size = 0x4, offset = 0, fixed_abs, tag = 'sflag constant byte address 0x0 - dummy sync flag']
  #allocation30 [shape = 's32[]', space=sflag, size = 0x4, offset = 0, fixed_abs, tag = 'sflag constant byte address 0x0 - dummy sync flag']
  #allocation31 [shape = 's32[]', space=sflag, size = 0x4, offset = 0, fixed_abs, tag = 'sflag constant byte address 0x0 - dummy sync flag']
  #allocation32 [shape = 's32[]', space=sflag, size = 0x4, offset = 0, fixed_abs, tag = 'sflag constant byte address 0x0 - dummy sync flag']
  #allocation33 [shape = 's32[]', space=sflag, size = 0x4, offset = 0, fixed_abs, tag = 'sflag constant byte address 0x0 - dummy sync flag']
  #allocation34 [shape = 's32[]', space=sflag, size = 0x4, offset = 0, fixed_abs, tag = 'sflag constant byte address 0x0 - dummy sync flag']
  #allocation35 [shape = 's32[]', space=sflag, size = 0x4, offset = 0, fixed_abs, tag = 'sflag constant byte address 0x0 - dummy sync flag']
  #allocation36 [shape = 's32[]', space=sflag, size = 0x4, offset = 0, fixed_abs, tag = 'sflag constant byte address 0x0 - dummy sync flag']
  #allocation37 [shape = 's32[]', space=sflag, size = 0x4, offset = 0, fixed_abs, tag = 'sflag constant byte address 0x0 - dummy sync flag']
  #allocation38 [shape = 's32[]', space=sflag, size = 0x4, offset = 0, fixed_abs, tag = 'sflag constant byte address 0x0 - dummy sync flag']
  #allocation39 [shape = 's32[]', space=sflag, size = 0x4, offset = 0, fixed_abs, tag = 'sflag constant byte address 0x0 - dummy sync flag']
  #allocation40 [shape = 's32[]', space=sflag, size = 0x4, offset = 0, fixed_abs, tag = 'sflag constant byte address 0x0 - dummy sync flag']
  #allocation41 [shape = 's32[]', space=sflag, size = 0x4, offset = 0, fixed_abs, tag = 'sflag constant byte address 0x0 - dummy sync flag']
  #allocation42 [shape = 's32[]', space=sflag, size = 0x4, offset = 0, fixed_abs, tag = 'sflag constant byte address 0x0 - dummy sync flag']
  #allocation43 [shape = 's32[]', space=sflag, size = 0x4, offset = 0, fixed_abs, tag = 'sflag constant byte address 0x0 - dummy sync flag']
  %s0 = inlined_call_operand.vmem [shape: s32[16], index: 0, kind: input, shape index: {}]
  %s1 = inlined_call_operand.vmem [shape: s32[16], index: 1, kind: input, shape index: {}]
  %s2 = inlined_call_operand.vmem [shape: s32[16,1], index: 2, kind: input, shape index: {}]
  %s3 = inlined_call_operand.vmem [shape: f32[2,128], index: 3, kind: input, shape index: {}]
  %s4 = inlined_call_operand.hbm [shape: f32[64,128], index: 4, kind: input, shape index: {}]
  %s5 = inlined_call_operand.hbm [shape: f32[32,128], index: 5, kind: input, shape index: {}]
  %s6 = inlined_call_operand.hbm [shape: f32[16,128], index: 6, kind: output, shape index: {}]
  %s7 = sld [smem:[#allocation0]]
  $region105: #{tpu_custom_call.1} parent=0
    _
  %s9 = ssub.s32 1, %s7
  %s10 = scalar_select 0, %s9, %s7
  %s12 = sshll.u32 %s0, 4
  %s13 = int_to_ptr.vmem [resolvable:$true] %s12
  %15 = dma.vmem_to_smem %s13, 16, [#allocation6], [#allocation5]
  %s17 = sshll.u32 %s1, 4
  %s18 = int_to_ptr.vmem [resolvable:$true] %s17
  %20 = dma.vmem_to_smem %s18, 16, [#allocation7], [#allocation5]
  %22 = dma.done [#allocation5], 32
  %23 = sfence
  $region1: #{tpu_custom_call.1} parent=0
    #allocation8 [shape = 'u8[8192]{0}', space=vmem, size = 0x2000, scoped, tag = 'output window, operand 0']
    #allocation9 [shape = 's32[2]{0}', space=sflag, size = 0x8, scoped, tag = 'scoped memory for tpu_custom_call.1']
    %24 = vsyncpa [#allocation9], 0
    %s25 = scalar_lea.sflag [#allocation9], 1
    %26 = vsyncpa %s25, 0
    loop: start=0, step=1, limit=4
    $region2: #{tpu_custom_call.1} parent=1 // loop_pre_header
      _
    $region3: #{tpu_custom_call.1} parent=1 // loop_header
      %s28 = sphi 0, %s32
      %p29 = scmp.ge.s32.totalorder %s28, 4
      %s38 = sphi 0, %s40
      %s41 = sphi 0, %s38
      %s42 = sphi 0, %s41
      %s58 = sphi 0, %s42
      %s62 = sphi 0, %s62
      %s64 = sphi 0, %s62
      %s65 = sphi 0, %s64
      %s79 = sphi 0, %s65
      %s85 = sphi 0, %s87
      %s88 = sphi 0, %s85
      %s89 = sphi 0, %s88
      %s105 = sphi 0, %s89
    $region4: #{tpu_custom_call.1} parent=1 // loop_header_branch
      %31 = sbr.rel (%p29) target = $region8
    $region5: #{tpu_custom_call.1} parent=1 // loop_body
      %s33 = ssub.s32 %s28, 1
      %s34 = ssub.s32 %s28, 2
      %s35 = sadd.s32 %s28, 1
      %s36 = ssub.s32 %s28, %s35
      %p37 = scmp.eq.s32.totalorder %s36, 0
      %s39 = sadd.s32 %s38, 1
      %s40 = scalar_select %p37, %s38, %s39
      %p43 = pneg %p37
      %p44 = scmp.eq.s32.totalorder %s28, 1
      %p45 = por %p43, %p44
      %p46 = scmp.ne.s32.totalorder %s38, %s41
      %p47 = scmp.eq.s32.totalorder %s28, 0
      %p48 = por %p46, %p47
      %p49 = scmp.ne.s32.totalorder %s38, %s41
      %p50 = scmp.eq.s32.totalorder %s33, 1
      %p51 = por %p49, %p50
      %p52 = scmp.ne.s32.totalorder %s41, %s42
      %p53 = scmp.eq.s32.totalorder %s33, 0
      %p54 = por %p52, %p53
      %p55 = scmp.ne.s32.totalorder %s41, %s42
      %p56 = scmp.eq.s32.totalorder %s34, 1
      %p57 = por %p55, %p56
      %p59 = scmp.ne.s32.totalorder %s42, %s58
      %p60 = scmp.eq.s32.totalorder %s34, 0
      %p61 = por %p59, %p60
      %s63 = sadd.s32 %s62, 1
      %p66 = scmp.eq.s32.totalorder %s28, 1
      %p67 = scmp.ne.s32.totalorder %s62, %s64
      %p68 = scmp.eq.s32.totalorder %s28, 0
      %p69 = por %p67, %p68
      %p70 = scmp.ne.s32.totalorder %s62, %s64
      %p71 = scmp.eq.s32.totalorder %s33, 1
      %p72 = por %p70, %p71
      %p73 = scmp.ne.s32.totalorder %s64, %s65
      %p74 = scmp.eq.s32.totalorder %s33, 0
      %p75 = por %p73, %p74
      %p76 = scmp.ne.s32.totalorder %s64, %s65
      %p77 = scmp.eq.s32.totalorder %s34, 1
      %p78 = por %p76, %p77
      %p80 = scmp.ne.s32.totalorder %s65, %s79
      %p81 = scmp.eq.s32.totalorder %s34, 0
      %p82 = por %p80, %p81
      %s83 = ssub.s32 %s28, %s35
      %p84 = scmp.eq.s32.totalorder %s83, 0
      %s86 = sadd.s32 %s85, 1
      %s87 = scalar_select %p84, %s85, %s86
      %p90 = pneg %p84
      %p91 = scmp.eq.s32.totalorder %s28, 1
      %p92 = por %p90, %p91
      %p93 = scmp.ne.s32.totalorder %s85, %s88
      %p94 = scmp.eq.s32.totalorder %s28, 0
      %p95 = por %p93, %p94
      %p96 = scmp.ne.s32.totalorder %s85, %s88
      %p97 = scmp.eq.s32.totalorder %s33, 1
      %p98 = por %p96, %p97
      %p99 = scmp.ne.s32.totalorder %s88, %s89
      %p100 = scmp.eq.s32.totalorder %s33, 0
      %p101 = por %p99, %p100
      %p102 = scmp.ne.s32.totalorder %s88, %s89
      %p103 = scmp.eq.s32.totalorder %s34, 1
      %p104 = por %p102, %p103
      %p106 = scmp.ne.s32.totalorder %s89, %s105
      %p107 = scmp.eq.s32.totalorder %s34, 0
      %p108 = por %p106, %p107
      %p109 = scmp.le.s32.totalorder 1, %s28
      %p110 = scmp.lt.s32.totalorder %s28, 3
      %p111 = pnand %p109, %p110
      %p112 = pneg %p111
      // Predicated region
      $region9: #{tpu_custom_call.1} parent=5 // pred_check
        _
      $region10: #{tpu_custom_call.1} parent=5 // pred_check_branch
        %114 = sbr.rel (%p111) target = $region12
      $region11: #{tpu_custom_call.1} parent=5 // pred_region
        %s115 = ssub.s32 %s28, 1
        // Predicated region
        $region13: #{tpu_custom_call.1} parent=11 // pred_check
          %p116 = pneg %p75
        $region14: #{tpu_custom_call.1} parent=11 // pred_check_branch
          %118 = sbr.rel (%p116) target = $region16
        $region15: #{tpu_custom_call.1} parent=11 // pred_region
          _
        $region16: #{tpu_custom_call.1} parent=11 // pred_fallthru
          _
      $region12: #{tpu_custom_call.1} parent=5 // pred_fallthru
        _
      %p119 = scmp.lt.s32.totalorder %s28, 2
      // Predicated region
      $region17: #{tpu_custom_call.1} parent=5 // pred_check
        %p120 = pneg %p119
      $region18: #{tpu_custom_call.1} parent=5 // pred_check_branch
        %122 = sbr.rel (%p120) target = $region20
      $region19: #{tpu_custom_call.1} parent=5 // pred_region
        // Predicated region
        $region21: #{tpu_custom_call.1} parent=19 // pred_check
          %p123 = pneg %p48
        $region22: #{tpu_custom_call.1} parent=19 // pred_check_branch
          %125 = sbr.rel (%p123) target = $region24
        $region23: #{tpu_custom_call.1} parent=19 // pred_region
          %p126 = scmp.lt.s32.totalorder %s28, 1
          %s127 = scalar_select %p126, %s28, 1
          %s128 = smul.addr %s127, 8
          %s129 = scalar_lea.vmem %s2, %s128
        $region24: #{tpu_custom_call.1} parent=19 // pred_fallthru
          _
      $region20: #{tpu_custom_call.1} parent=5 // pred_fallthru
        _
      %p130 = scmp.le.s32.totalorder 1, %s28
      %p131 = scmp.lt.s32.totalorder %s28, 3
      %p132 = pnand %p130, %p131
      %p133 = pneg %p132
      // Predicated region
      $region25: #{tpu_custom_call.1} parent=5 // pred_check
        _
      $region26: #{tpu_custom_call.1} parent=5 // pred_check_branch
        %135 = sbr.rel (%p132) target = $region28
      $region27: #{tpu_custom_call.1} parent=5 // pred_region
        %s136 = ssub.s32 %s28, 1
        %p137 = scmp.lt.s32.totalorder %s33, 1
        %s138 = scalar_select %p137, %s33, 1
        %s139 = smul.addr %s138, 8
        %s140 = scalar_lea.vmem %s2, %s139
        %p141 = pneg %p54
        %p142 = pneg %p51
        %p143 = pneg %p75
        %p144 = pneg %p72
        %p145 = pneg %p101
        %p146 = pneg %p98
        %s147 = sand.u32 %s88, 1
        %s148 = scalar_lea.sflag [#allocation9], %s147
        %s149 = sand.u32 %s88, 1
        %s150 = smul.addr %s149, 8
        %s151 = scalar_lea.vmem [#allocation8], %s150
        %p152 = scmp.lt.s32.totalorder %s33, 1
        %s153 = scalar_select %p152, %s33, 1
        %s154 = smul.addr %s153, 8
        %s155 = scalar_lea.vmem %s2, %s154
        %s156 = smul.u32 %s33, 8
        %s157 = sld [smem:[#allocation6 + %s156]]
        %s158 = sld [smem:[#allocation7 + %s156]]
        %s159 = scalar_lea.hbm %s4, %s157
        // Predicated region
        $region29: #{tpu_custom_call.1} parent=27 // pred_check
          _
        $region30: #{tpu_custom_call.1} parent=27 // pred_check_branch
          %161 = sbr.rel target = $region32
        $region31: #{tpu_custom_call.1} parent=27 // pred_region
          %162 = sst [smem:[#allocation12]] [#allocation11]
          %163 = sst [smem:[#allocation13]] [#allocation10]
        $region32: #{tpu_custom_call.1} parent=27 // pred_fallthru
          _
        %165 = shalt.err (0)
        %s167 = sshll.u32 %s159, 4
        %s168 = int_to_ptr.hbm [resolvable:$true] %s167
        %s169 = sshll.u32 [#allocation2], 4
        %s170 = int_to_ptr.vmem [resolvable:$true] %s169
        %172 = dma.hbm_to_vmem [thread:$0]  %s168, 16, %s170, [#allocation4]
        %s173 = scalar_lea.hbm %s5, %s158
        %s174 = scalar_lea.sflag [#allocation4], 8
        // Predicated region
        $region33: #{tpu_custom_call.1} parent=27 // pred_check
          _
        $region34: #{tpu_custom_call.1} parent=27 // pred_check_branch
          %176 = sbr.rel target = $region36
        $region35: #{tpu_custom_call.1} parent=27 // pred_region
          %177 = sst [smem:[#allocation12]] [#allocation15]
          %178 = sst [smem:[#allocation13]] [#allocation14]
        $region36: #{tpu_custom_call.1} parent=27 // pred_fallthru
          _
        %180 = shalt.err (0)
        %s182 = sshll.u32 %s173, 4
        %s183 = int_to_ptr.hbm [resolvable:$true] %s182
        %s184 = sshll.u32 [#allocation3], 4
        %s185 = int_to_ptr.vmem [resolvable:$true] %s184
        %187 = dma.hbm_to_vmem [thread:$0]  %s183, 16, %s185, %s174
        %s188 = sadd.s32 %s156, 1
        %s189 = sld [smem:[#allocation6 + %s188]]
        %s190 = sld [smem:[#allocation7 + %s188]]
        %s191 = scalar_lea.hbm %s4, %s189
        %s192 = scalar_lea.vmem [#allocation2], 1
        %s193 = scalar_lea.sflag [#allocation4], 1
        // Predicated region
        $region37: #{tpu_custom_call.1} parent=27 // pred_check
          _
        $region38: #{tpu_custom_call.1} parent=27 // pred_check_branch
          %195 = sbr.rel target = $region40
        $region39: #{tpu_custom_call.1} parent=27 // pred_region
          %196 = sst [smem:[#allocation12]] [#allocation17]
          %197 = sst [smem:[#allocation13]] [#allocation16]
        $region40: #{tpu_custom_call.1} parent=27 // pred_fallthru
          _
        %199 = shalt.err (0)
        %s201 = sshll.u32 %s191, 4
        %s202 = int_to_ptr.hbm [resolvable:$true] %s201
        %s203 = sshll.u32 %s192, 4
        %s204 = int_to_ptr.vmem [resolvable:$true] %s203
        %206 = dma.hbm_to_vmem [thread:$0]  %s202, 16, %s204, %s193
        %s207 = scalar_lea.hbm %s5, %s190
        %s208 = scalar_lea.vmem [#allocation3], 1
        %s209 = scalar_lea.sflag [#allocation4], 9
        // Predicated region
        $region41: #{tpu_custom_call.1} parent=27 // pred_check
          _
        $region42: #{tpu_custom_call.1} parent=27 // pred_check_branch
          %211 = sbr.rel target = $region44
        $region43: #{tpu_custom_call.1} parent=27 // pred_region
          %212 = sst [smem:[#allocation12]] [#allocation19]
          %213 = sst [smem:[#allocation13]] [#allocation18]
        $region44: #{tpu_custom_call.1} parent=27 // pred_fallthru
          _
        %215 = shalt.err (0)
        %s217 = sshll.u32 %s207, 4
        %s218 = int_to_ptr.hbm [resolvable:$true] %s217
        %s219 = sshll.u32 %s208, 4
        %s220 = int_to_ptr.vmem [resolvable:$true] %s219
        %222 = dma.hbm_to_vmem [thread:$0]  %s218, 16, %s220, %s209
        %s223 = sadd.s32 %s156, 2
        %s224 = sld [smem:[#allocation6 + %s223]]
        %s225 = sld [smem:[#allocation7 + %s223]]
        %s226 = scalar_lea.hbm %s4, %s224
        %s227 = scalar_lea.vmem [#allocation2], 2
        %s228 = scalar_lea.sflag [#allocation4], 2
        // Predicated region
        $region45: #{tpu_custom_call.1} parent=27 // pred_check
          _
        $region46: #{tpu_custom_call.1} parent=27 // pred_check_branch
          %230 = sbr.rel target = $region48
        $region47: #{tpu_custom_call.1} parent=27 // pred_region
          %231 = sst [smem:[#allocation12]] [#allocation21]
          %232 = sst [smem:[#allocation13]] [#allocation20]
        $region48: #{tpu_custom_call.1} parent=27 // pred_fallthru
          _
        %234 = shalt.err (0)
        %s236 = sshll.u32 %s226, 4
        %s237 = int_to_ptr.hbm [resolvable:$true] %s236
        %s238 = sshll.u32 %s227, 4
        %s239 = int_to_ptr.vmem [resolvable:$true] %s238
        %241 = dma.hbm_to_vmem [thread:$0]  %s237, 16, %s239, %s228
        %s242 = scalar_lea.hbm %s5, %s225
        %s243 = scalar_lea.vmem [#allocation3], 2
        %s244 = scalar_lea.sflag [#allocation4], 10
        // Predicated region
        $region49: #{tpu_custom_call.1} parent=27 // pred_check
          _
        $region50: #{tpu_custom_call.1} parent=27 // pred_check_branch
          %246 = sbr.rel target = $region52
        $region51: #{tpu_custom_call.1} parent=27 // pred_region
          %247 = sst [smem:[#allocation12]] [#allocation23]
          %248 = sst [smem:[#allocation13]] [#allocation22]
        $region52: #{tpu_custom_call.1} parent=27 // pred_fallthru
          _
        %250 = shalt.err (0)
        %s252 = sshll.u32 %s242, 4
        %s253 = int_to_ptr.hbm [resolvable:$true] %s252
        %s254 = sshll.u32 %s243, 4
        %s255 = int_to_ptr.vmem [resolvable:$true] %s254
        %257 = dma.hbm_to_vmem [thread:$0]  %s253, 16, %s255, %s244
        %s258 = sadd.s32 %s156, 3
        %s259 = sld [smem:[#allocation6 + %s258]]
        %s260 = sld [smem:[#allocation7 + %s258]]
        %s261 = scalar_lea.hbm %s4, %s259
        %s262 = scalar_lea.vmem [#allocation2], 3
        %s263 = scalar_lea.sflag [#allocation4], 3
        // Predicated region
        $region53: #{tpu_custom_call.1} parent=27 // pred_check
          _
        $region54: #{tpu_custom_call.1} parent=27 // pred_check_branch
          %265 = sbr.rel target = $region56
        $region55: #{tpu_custom_call.1} parent=27 // pred_region
          %266 = sst [smem:[#allocation12]] [#allocation25]
          %267 = sst [smem:[#allocation13]] [#allocation24]
        $region56: #{tpu_custom_call.1} parent=27 // pred_fallthru
          _
        %269 = shalt.err (0)
        %s271 = sshll.u32 %s261, 4
        %s272 = int_to_ptr.hbm [resolvable:$true] %s271
        %s273 = sshll.u32 %s262, 4
        %s274 = int_to_ptr.vmem [resolvable:$true] %s273
        %276 = dma.hbm_to_vmem [thread:$0]  %s272, 16, %s274, %s263
        %s277 = scalar_lea.hbm %s5, %s260
        %s278 = scalar_lea.vmem [#allocation3], 3
        %s279 = scalar_lea.sflag [#allocation4], 11
        // Predicated region
        $region57: #{tpu_custom_call.1} parent=27 // pred_check
          _
        $region58: #{tpu_custom_call.1} parent=27 // pred_check_branch
          %281 = sbr.rel target = $region60
        $region59: #{tpu_custom_call.1} parent=27 // pred_region
          %282 = sst [smem:[#allocation12]] [#allocation27]
          %283 = sst [smem:[#allocation13]] [#allocation26]
        $region60: #{tpu_custom_call.1} parent=27 // pred_fallthru
          _
        %285 = shalt.err (0)
        %s287 = sshll.u32 %s277, 4
        %s288 = int_to_ptr.hbm [resolvable:$true] %s287
        %s289 = sshll.u32 %s278, 4
        %s290 = int_to_ptr.vmem [resolvable:$true] %s289
        %292 = dma.hbm_to_vmem [thread:$0]  %s288, 16, %s290, %s279
        %s293 = sadd.s32 %s156, 4
        %s294 = sld [smem:[#allocation6 + %s293]]
        %s295 = sld [smem:[#allocation7 + %s293]]
        %s296 = scalar_lea.hbm %s4, %s294
        %s297 = scalar_lea.vmem [#allocation2], 4
        %s298 = scalar_lea.sflag [#allocation4], 4
        // Predicated region
        $region61: #{tpu_custom_call.1} parent=27 // pred_check
          _
        $region62: #{tpu_custom_call.1} parent=27 // pred_check_branch
          %300 = sbr.rel target = $region64
        $region63: #{tpu_custom_call.1} parent=27 // pred_region
          %301 = sst [smem:[#allocation12]] [#allocation29]
          %302 = sst [smem:[#allocation13]] [#allocation28]
        $region64: #{tpu_custom_call.1} parent=27 // pred_fallthru
          _
        %304 = shalt.err (0)
        %s306 = sshll.u32 %s296, 4
        %s307 = int_to_ptr.hbm [resolvable:$true] %s306
        %s308 = sshll.u32 %s297, 4
        %s309 = int_to_ptr.vmem [resolvable:$true] %s308
        %311 = dma.hbm_to_vmem [thread:$0]  %s307, 16, %s309, %s298
        %s312 = scalar_lea.hbm %s5, %s295
        %s313 = scalar_lea.vmem [#allocation3], 4
        %s314 = scalar_lea.sflag [#allocation4], 12
        // Predicated region
        $region65: #{tpu_custom_call.1} parent=27 // pred_check
          _
        $region66: #{tpu_custom_call.1} parent=27 // pred_check_branch
          %316 = sbr.rel target = $region68
        $region67: #{tpu_custom_call.1} parent=27 // pred_region
          %317 = sst [smem:[#allocation12]] [#allocation31]
          %318 = sst [smem:[#allocation13]] [#allocation30]
        $region68: #{tpu_custom_call.1} parent=27 // pred_fallthru
          _
        %320 = shalt.err (0)
        %s322 = sshll.u32 %s312, 4
        %s323 = int_to_ptr.hbm [resolvable:$true] %s322
        %s324 = sshll.u32 %s313, 4
        %s325 = int_to_ptr.vmem [resolvable:$true] %s324
        %327 = dma.hbm_to_vmem [thread:$0]  %s323, 16, %s325, %s314
        %s328 = sadd.s32 %s156, 5
        %s329 = sld [smem:[#allocation6 + %s328]]
        %s330 = sld [smem:[#allocation7 + %s328]]
        %s331 = scalar_lea.hbm %s4, %s329
        %s332 = scalar_lea.vmem [#allocation2], 5
        %s333 = scalar_lea.sflag [#allocation4], 5
        // Predicated region
        $region69: #{tpu_custom_call.1} parent=27 // pred_check
          _
        $region70: #{tpu_custom_call.1} parent=27 // pred_check_branch
          %335 = sbr.rel target = $region72
        $region71: #{tpu_custom_call.1} parent=27 // pred_region
          %336 = sst [smem:[#allocation12]] [#allocation33]
          %337 = sst [smem:[#allocation13]] [#allocation32]
        $region72: #{tpu_custom_call.1} parent=27 // pred_fallthru
          _
        %339 = shalt.err (0)
        %s341 = sshll.u32 %s331, 4
        %s342 = int_to_ptr.hbm [resolvable:$true] %s341
        %s343 = sshll.u32 %s332, 4
        %s344 = int_to_ptr.vmem [resolvable:$true] %s343
        %346 = dma.hbm_to_vmem [thread:$0]  %s342, 16, %s344, %s333
        %s347 = scalar_lea.hbm %s5, %s330
        %s348 = scalar_lea.vmem [#allocation3], 5
        %s349 = scalar_lea.sflag [#allocation4], 13
        // Predicated region
        $region73: #{tpu_custom_call.1} parent=27 // pred_check
          _
        $region74: #{tpu_custom_call.1} parent=27 // pred_check_branch
          %351 = sbr.rel target = $region76
        $region75: #{tpu_custom_call.1} parent=27 // pred_region
          %352 = sst [smem:[#allocation12]] [#allocation35]
          %353 = sst [smem:[#allocation13]] [#allocation34]
        $region76: #{tpu_custom_call.1} parent=27 // pred_fallthru
          _
        %355 = shalt.err (0)
        %s357 = sshll.u32 %s347, 4
        %s358 = int_to_ptr.hbm [resolvable:$true] %s357
        %s359 = sshll.u32 %s348, 4
        %s360 = int_to_ptr.vmem [resolvable:$true] %s359
        %362 = dma.hbm_to_vmem [thread:$0]  %s358, 16, %s360, %s349
        %s363 = sadd.s32 %s156, 6
        %s364 = sld [smem:[#allocation6 + %s363]]
        %s365 = sld [smem:[#allocation7 + %s363]]
        %s366 = scalar_lea.hbm %s4, %s364
        %s367 = scalar_lea.vmem [#allocation2], 6
        %s368 = scalar_lea.sflag [#allocation4], 6
        // Predicated region
        $region77: #{tpu_custom_call.1} parent=27 // pred_check
          _
        $region78: #{tpu_custom_call.1} parent=27 // pred_check_branch
          %370 = sbr.rel target = $region80
        $region79: #{tpu_custom_call.1} parent=27 // pred_region
          %371 = sst [smem:[#allocation12]] [#allocation37]
          %372 = sst [smem:[#allocation13]] [#allocation36]
        $region80: #{tpu_custom_call.1} parent=27 // pred_fallthru
          _
        %374 = shalt.err (0)
        %s376 = sshll.u32 %s366, 4
        %s377 = int_to_ptr.hbm [resolvable:$true] %s376
        %s378 = sshll.u32 %s367, 4
        %s379 = int_to_ptr.vmem [resolvable:$true] %s378
        %381 = dma.hbm_to_vmem [thread:$0]  %s377, 16, %s379, %s368
        %s382 = scalar_lea.hbm %s5, %s365
        %s383 = scalar_lea.vmem [#allocation3], 6
        %s384 = scalar_lea.sflag [#allocation4], 14
        // Predicated region
        $region81: #{tpu_custom_call.1} parent=27 // pred_check
          _
        $region82: #{tpu_custom_call.1} parent=27 // pred_check_branch
          %386 = sbr.rel target = $region84
        $region83: #{tpu_custom_call.1} parent=27 // pred_region
          %387 = sst [smem:[#allocation12]] [#allocation39]
          %388 = sst [smem:[#allocation13]] [#allocation38]
        $region84: #{tpu_custom_call.1} parent=27 // pred_fallthru
          _
        %390 = shalt.err (0)
        %s392 = sshll.u32 %s382, 4
        %s393 = int_to_ptr.hbm [resolvable:$true] %s392
        %s394 = sshll.u32 %s383, 4
        %s395 = int_to_ptr.vmem [resolvable:$true] %s394
        %397 = dma.hbm_to_vmem [thread:$0]  %s393, 16, %s395, %s384
        %s398 = sadd.s32 %s156, 7
        %s399 = sld [smem:[#allocation6 + %s398]]
        %s400 = sld [smem:[#allocation7 + %s398]]
        %s401 = scalar_lea.hbm %s4, %s399
        %s402 = scalar_lea.vmem [#allocation2], 7
        %s403 = scalar_lea.sflag [#allocation4], 7
        // Predicated region
        $region85: #{tpu_custom_call.1} parent=27 // pred_check
          _
        $region86: #{tpu_custom_call.1} parent=27 // pred_check_branch
          %405 = sbr.rel target = $region88
        $region87: #{tpu_custom_call.1} parent=27 // pred_region
          %406 = sst [smem:[#allocation12]] [#allocation41]
          %407 = sst [smem:[#allocation13]] [#allocation40]
        $region88: #{tpu_custom_call.1} parent=27 // pred_fallthru
          _
        %409 = shalt.err (0)
        %s411 = sshll.u32 %s401, 4
        %s412 = int_to_ptr.hbm [resolvable:$true] %s411
        %s413 = sshll.u32 %s402, 4
        %s414 = int_to_ptr.vmem [resolvable:$true] %s413
        %416 = dma.hbm_to_vmem [thread:$0]  %s412, 16, %s414, %s403
        %s417 = scalar_lea.hbm %s5, %s400
        %s418 = scalar_lea.vmem [#allocation3], 7
        %s419 = scalar_lea.sflag [#allocation4], 15
        // Predicated region
        $region89: #{tpu_custom_call.1} parent=27 // pred_check
          _
        $region90: #{tpu_custom_call.1} parent=27 // pred_check_branch
          %421 = sbr.rel target = $region92
        $region91: #{tpu_custom_call.1} parent=27 // pred_region
          %422 = sst [smem:[#allocation12]] [#allocation43]
          %423 = sst [smem:[#allocation13]] [#allocation42]
        $region92: #{tpu_custom_call.1} parent=27 // pred_fallthru
          _
        %425 = shalt.err (0)
        %s427 = sshll.u32 %s417, 4
        %s428 = int_to_ptr.hbm [resolvable:$true] %s427
        %s429 = sshll.u32 %s418, 4
        %s430 = int_to_ptr.vmem [resolvable:$true] %s429
        %432 = dma.hbm_to_vmem [thread:$0]  %s428, 16, %s430, %s419
        %s433 = smul.u32 1, 1
        %s434 = sshll.u32 %s433, 4
        %435 = dma.done [#allocation4], %s434
        %s436 = sshll.u32 %s433, 4
        %437 = dma.done %s174, %s436
        %s438 = sshll.u32 %s433, 4
        %439 = dma.done %s193, %s438
        %s440 = sshll.u32 %s433, 4
        %441 = dma.done %s209, %s440
        %s442 = sshll.u32 %s433, 4
        %443 = dma.done %s228, %s442
        %s444 = sshll.u32 %s433, 4
        %445 = dma.done %s244, %s444
        %s446 = sshll.u32 %s433, 4
        %447 = dma.done %s263, %s446
        %s448 = sshll.u32 %s433, 4
        %449 = dma.done %s279, %s448
        %s450 = sshll.u32 %s433, 4
        %451 = dma.done %s298, %s450
        %s452 = sshll.u32 %s433, 4
        %453 = dma.done %s314, %s452
        %s454 = sshll.u32 %s433, 4
        %455 = dma.done %s333, %s454
        %s456 = sshll.u32 %s433, 4
        %457 = dma.done %s349, %s456
        %s458 = sshll.u32 %s433, 4
        %459 = dma.done %s368, %s458
        %s460 = sshll.u32 %s433, 4
        %461 = dma.done %s384, %s460
        %s462 = sshll.u32 %s433, 4
        %463 = dma.done %s403, %s462
        %s464 = sshll.u32 %s433, 4
        %465 = dma.done %s419, %s464
        %v466 = vld [vmem:[%s155] sm:$0xff]
        %v467 = vld [vmem:[%s3] sm:$0x1]
        %v468 = vld [vmem:[%s3 + $0x1] sm:$0x1]
        %vm469 = vcmp.eq.s32.totalorder %v466, 0
        %v470 = vsel %vm469, 1, 0
        %471 = vset.pattern.permute.xlu0 0
        %472 = vperm.xlu0 %471, %v470
        %v473 = vpop.permute.xlu0 %472
        %vm474 = vcmp.eq.s32.totalorder %v473, 1
        %v475 = vperm.slane %v467, 0
        %v476 = vperm.slane %v468, 0
        %v477 = vsel %vm474, %v475, %v476
        %v478 = vld [vmem:[#allocation2] sm:$0xff]
        %v479 = vld [vmem:[#allocation3] sm:$0xff]
        %v480 = vadd.f32 %v478, %v479
        %v481 = vadd.f32 %v480, %v477
        %482 = vst [vmem:[%s151] sm:$0xff] %v481
        %s483 = sand.u32 %s88, 1
        %s484 = scalar_lea.sflag [#allocation9], %s483
        %s485 = sand.u32 %s88, 1
        %s486 = smul.addr %s485, 8
        %s487 = scalar_lea.vmem [#allocation8], %s486
        // Predicated region
        $region93: #{tpu_custom_call.1} parent=27 // pred_check
          %p488 = pneg %p98
        $region94: #{tpu_custom_call.1} parent=27 // pred_check_branch
          %490 = sbr.rel (%p488) target = $region96
        $region95: #{tpu_custom_call.1} parent=27 // pred_region
          %492 = vsyncadd %s484, 0
          %s493 = smul.addr %s33, 8
          %s494 = scalar_lea.hbm %s6, %s493
          %s496 = sshll.u32 %s487, 4
          %s497 = int_to_ptr.vmem [resolvable:$true] %s496
          %s498 = sshll.u32 %s494, 4
          %s499 = int_to_ptr.hbm [resolvable:$true] %s498
          %501 = dma.vmem_to_hbm [thread:$0]  %s497, 128, %s499, %s484
        $region96: #{tpu_custom_call.1} parent=27 // pred_fallthru
          _
      $region28: #{tpu_custom_call.1} parent=5 // pred_fallthru
        _
      %p502 = scmp.le.s32.totalorder 2, %s28
      // Predicated region
      $region97: #{tpu_custom_call.1} parent=5 // pred_check
        %p503 = pneg %p502
      $region98: #{tpu_custom_call.1} parent=5 // pred_check_branch
        %505 = sbr.rel (%p503) target = $region100
      $region99: #{tpu_custom_call.1} parent=5 // pred_region
        %s506 = ssub.s32 %s28, 2
        // Predicated region
        $region101: #{tpu_custom_call.1} parent=99 // pred_check
          %p507 = pneg %p104
        $region102: #{tpu_custom_call.1} parent=99 // pred_check_branch
          %509 = sbr.rel (%p507) target = $region104
        $region103: #{tpu_custom_call.1} parent=99 // pred_region
          %s510 = sand.u32 %s89, 1
          %s511 = scalar_lea.sflag [#allocation9], %s510
          %s512 = sand.u32 %s89, 1
          %s513 = smul.addr %s512, 8
          %s514 = scalar_lea.vmem [#allocation8], %s513
          %516 = dma.done %s511, 128
        $region104: #{tpu_custom_call.1} parent=99 // pred_fallthru
          _
      $region100: #{tpu_custom_call.1} parent=5 // pred_fallthru
        _
    $region6: #{tpu_custom_call.1} parent=1 // loop_footer
      %s32 = sadd.s32 1, %s28
    $region7: #{tpu_custom_call.1} parent=1 // loop_footer_branch
      %27 = sbr.rel target = $region3
    $region8: #{tpu_custom_call.1} parent=1 // loop_exit
      _
    %517 = vsyncpa [#allocation9], 1
    %s518 = scalar_lea.sflag [#allocation9], 1
    %519 = vsyncpa %s518, 1
  %520 = vsyncmov [#allocation4]
  %s521 = vpop.sfrf %520
  %p522 = scmp.eq.s32.totalorder %s521, 0
  %p523 = pneg %p522
  %525 = shalt.err (%p523)
  %s526 = scalar_lea.sflag [#allocation4], 1
  %527 = vsyncmov %s526
  %s528 = vpop.sfrf %527
  %p529 = scmp.eq.s32.totalorder %s528, 0
  %p530 = pneg %p529
  %532 = shalt.err (%p530)
  %s533 = scalar_lea.sflag [#allocation4], 2
  %534 = vsyncmov %s533
  %s535 = vpop.sfrf %534
  %p536 = scmp.eq.s32.totalorder %s535, 0
  %p537 = pneg %p536
  %539 = shalt.err (%p537)
  %s540 = scalar_lea.sflag [#allocation4], 3
  %541 = vsyncmov %s540
  %s542 = vpop.sfrf %541
  %p543 = scmp.eq.s32.totalorder %s542, 0
  %p544 = pneg %p543
  %546 = shalt.err (%p544)
  %s547 = scalar_lea.sflag [#allocation4], 4
  %548 = vsyncmov %s547
  %s549 = vpop.sfrf %548
  %p550 = scmp.eq.s32.totalorder %s549, 0
  %p551 = pneg %p550
  %553 = shalt.err (%p551)
  %s554 = scalar_lea.sflag [#allocation4], 5
  %555 = vsyncmov %s554
  %s556 = vpop.sfrf %555
  %p557 = scmp.eq.s32.totalorder %s556, 0
  %p558 = pneg %p557
  %560 = shalt.err (%p558)
  %s561 = scalar_lea.sflag [#allocation4], 6
  %562 = vsyncmov %s561
  %s563 = vpop.sfrf %562
  %p564 = scmp.eq.s32.totalorder %s563, 0
  %p565 = pneg %p564
  %567 = shalt.err (%p565)
  %s568 = scalar_lea.sflag [#allocation4], 7
  %569 = vsyncmov %s568
  %s570 = vpop.sfrf %569
  %p571 = scmp.eq.s32.totalorder %s570, 0
  %p572 = pneg %p571
  %574 = shalt.err (%p572)
  %s575 = scalar_lea.sflag [#allocation4], 8
  %576 = vsyncmov %s575
  %s577 = vpop.sfrf %576
  %p578 = scmp.eq.s32.totalorder %s577, 0
  %p579 = pneg %p578
  %581 = shalt.err (%p579)
  %s582 = scalar_lea.sflag [#allocation4], 9
  %583 = vsyncmov %s582
  %s584 = vpop.sfrf %583
  %p585 = scmp.eq.s32.totalorder %s584, 0
  %p586 = pneg %p585
  %588 = shalt.err (%p586)
  %s589 = scalar_lea.sflag [#allocation4], 10
  %590 = vsyncmov %s589
  %s591 = vpop.sfrf %590
  %p592 = scmp.eq.s32.totalorder %s591, 0
  %p593 = pneg %p592
  %595 = shalt.err (%p593)
  %s596 = scalar_lea.sflag [#allocation4], 11
  %597 = vsyncmov %s596
  %s598 = vpop.sfrf %597
  %p599 = scmp.eq.s32.totalorder %s598, 0
  %p600 = pneg %p599
  %602 = shalt.err (%p600)
  %s603 = scalar_lea.sflag [#allocation4], 12
  %604 = vsyncmov %s603
  %s605 = vpop.sfrf %604
  %p606 = scmp.eq.s32.totalorder %s605, 0
  %p607 = pneg %p606
  %609 = shalt.err (%p607)
  %s610 = scalar_lea.sflag [#allocation4], 13
  %611 = vsyncmov %s610
  %s612 = vpop.sfrf %611
  %p613 = scmp.eq.s32.totalorder %s612, 0
  %p614 = pneg %p613
  %616 = shalt.err (%p614)
  %s617 = scalar_lea.sflag [#allocation4], 14
  %618 = vsyncmov %s617
  %s619 = vpop.sfrf %618
  %p620 = scmp.eq.s32.totalorder %s619, 0
  %p621 = pneg %p620
  %623 = shalt.err (%p621)
  %s624 = scalar_lea.sflag [#allocation4], 15
  %625 = vsyncmov %s624
  %s626 = vpop.sfrf %625
  %p627 = scmp.eq.s32.totalorder %s626, 0
  %p628 = pneg %p627
  %630 = shalt.err (%p628)

</llo_original>
